<compile_context>
chip_gen: v7x
topology: tpu7x:2x2x1
jax: 0.10.0
libtpu: 0.0.40
codegen_flags: <defaults>
</compile_context>

<pallas_src>
import functools
import math

import jax
import jax.numpy as jnp
from jax.experimental import pallas as pl
from jax.experimental.pallas import tpu as pltpu


def _self_attention_kernel(
    x_ref,       # (Bblk, T, D)  f32 input rows for this batch block
    bias_ref,    # (Bblk, 1, T)  f32 additive key-padding bias (-1e30 on pad, 0 elsewhere)
    ln_g_ref,    # (1, D)        f32 LayerNorm gamma
    ln_b_ref,    # (1, D)        f32 LayerNorm beta
    wqkv_ref,    # (D, 3D)       matmul dtype, pre-transposed in_proj_weight (Q-scale folded)
    bqkv_ref,    # (1, 3D)       f32 in_proj_bias (Q-scale folded)
    wo_ref,      # (D, D)        matmul dtype, pre-transposed out_proj.weight
    bo_ref,      # (1, D)        f32 out_proj.bias
    o_ref,       # (Bblk, T, D)  f32 output rows
    *,
    num_heads: int,
):
    Bblk, T, D = x_ref.shape
    H = num_heads
    hd = D // H
    mm_dtype = wqkv_ref.dtype

    # ---- LayerNorm (f32, eps=1e-5) over features, on all Bblk*T rows at once ----
    x = x_ref[...].reshape(Bblk * T, D)
    mean = jnp.mean(x, axis=-1, keepdims=True)
    xc = x - mean
    var = jnp.mean(xc * xc, axis=-1, keepdims=True)
    xn = xc * jax.lax.rsqrt(var + 1e-5)
    xn = xn * ln_g_ref[0][None, :] + ln_b_ref[0][None, :]

    # ---- packed QKV projection: one (Bblk*T, D) x (D, 3D) MXU matmul, f32 accumulation ----
    qkv = jnp.dot(xn.astype(mm_dtype), wqkv_ref[...],
                  preferred_element_type=jnp.float32)
    qkv = qkv + bqkv_ref[0][None, :]                      # (Bblk*T, 3D) f32
    q = qkv[:, 0 * D:1 * D]                               # already scaled by 1/sqrt(hd)
    k = qkv[:, 1 * D:2 * D]
    v = qkv[:, 2 * D:3 * D]

    # ---- attention: static loops over the batch rows of the block and over heads ----
    ctx_rows = []
    for bi in range(Bblk):
        r0 = bi * T
        qb = q[r0:r0 + T, :]
        kb = k[r0:r0 + T, :]
        vb = v[r0:r0 + T, :]
        bias_b = bias_ref[bi]                             # (1, T) f32, broadcast over queries
        head_ctx = []
        for h in range(H):
            c0 = h * hd
            qh = qb[:, c0:c0 + hd].astype(mm_dtype)       # static lane slices, no relayout
            kh = kb[:, c0:c0 + hd].astype(mm_dtype)
            vh = vb[:, c0:c0 + hd].astype(mm_dtype)
            # q @ k^T without transposing k: contract the last dim of both operands.
            s = jax.lax.dot_general(qh, kh, (((1,), (1,)), ((), ())),
                                    preferred_element_type=jnp.float32)   # (T, T) f32
            s = s + bias_b                                # key-padding mask applied in f32
            m = jnp.max(s, axis=-1, keepdims=True)
            p = jnp.exp(s - m)
            denom = jnp.sum(p, axis=-1, keepdims=True)
            probs = p * pl.reciprocal(denom, approx=True)
            head_ctx.append(jnp.dot(probs.astype(mm_dtype), vh,
                                    preferred_element_type=jnp.float32))  # (T, hd)
        ctx_rows.append(jnp.concatenate(head_ctx, axis=-1))               # (T, D)
    ctx = jnp.concatenate(ctx_rows, axis=0)                               # (Bblk*T, D)

    # ---- output projection + dropout(eval)=identity + residual (f32) ----
    out = jnp.dot(ctx.astype(mm_dtype), wo_ref[...],
                  preferred_element_type=jnp.float32)
    out = out + bo_ref[0][None, :]
    # TODO(synk): training-mode dropout (p_dropout) not applied; kernel matches eval().
    o_ref[...] = (out + x).reshape(Bblk, T, D).astype(o_ref.dtype)


def _pick_block_b(B, T):
    """Largest divisor of B keeping block rows (Bblk*T) near the MXU sweet spot (~256 rows)."""
    best = 1
    for cand in range(1, B + 1):
        if B % cand == 0 and cand * T <= max(256, T):
            best = cand
    return best


def self_attention_forward(x, is_pad, params, num_heads, matmul_dtype=jnp.bfloat16):
    """x: (B, T, D) float32, is_pad: (B, T) bool (True = padded key). Returns (B, T, D)."""
    B, T, D = x.shape
    assert D % num_heads == 0
    hd = D // num_heads
    scale = 1.0 / math.sqrt(hd)

    # Additive key-padding bias, precomputed once (applied to f32 scores post-accumulation).
    # NOTE: a query row whose keys are ALL padded gets uniform attention here, whereas
    # nn.MultiheadAttention would produce NaN; the demo avoids that degenerate case.
    bias = jnp.where(is_pad, jnp.float32(-1e30), jnp.float32(0.0)).reshape(B, 1, T)

    ln_g = params['ln_gamma'].reshape(1, D).astype(jnp.float32)
    ln_b = params['ln_beta'].reshape(1, D).astype(jnp.float32)

    # Pre-transpose weights once at the XLA level and fold the 1/sqrt(head_dim) query scale
    # into the Q weight/bias (so the kernel never transposes or rescales per grid step).
    wqkv_t = params['in_proj_weight'].T                   # (D, 3D)
    wqkv_t = wqkv_t.at[:, :D].multiply(scale)
    bqkv = params['in_proj_bias'].at[:D].multiply(scale).reshape(1, 3 * D).astype(jnp.float32)
    wo_t = params['out_proj_weight'].T                    # (D, D)
    bo = params['out_proj_bias'].reshape(1, D).astype(jnp.float32)

    wqkv_t = wqkv_t.astype(matmul_dtype)
    wo_t = wo_t.astype(matmul_dtype)

    Bblk = _pick_block_b(B, T)
    kernel = functools.partial(_self_attention_kernel, num_heads=num_heads)

    return pl.pallas_call(
        kernel,
        out_shape=jax.ShapeDtypeStruct((B, T, D), x.dtype),
        grid_spec=pltpu.PrefetchScalarGridSpec(
            num_scalar_prefetch=0,
            grid=(B // Bblk,),
            in_specs=[
                pl.BlockSpec((Bblk, T, D), lambda b: (b, 0, 0)),    # x
                pl.BlockSpec((Bblk, 1, T), lambda b: (b, 0, 0)),    # key-padding bias
                pl.BlockSpec((1, D), lambda b: (0, 0)),             # ln gamma
                pl.BlockSpec((1, D), lambda b: (0, 0)),             # ln beta
                pl.BlockSpec((D, 3 * D), lambda b: (0, 0)),         # in_proj_weight^T (Q-scaled)
                pl.BlockSpec((1, 3 * D), lambda b: (0, 0)),         # in_proj_bias (Q-scaled)
                pl.BlockSpec((D, D), lambda b: (0, 0)),             # out_proj.weight^T
                pl.BlockSpec((1, D), lambda b: (0, 0)),             # out_proj.bias
            ],
            out_specs=pl.BlockSpec((Bblk, T, D), lambda b: (b, 0, 0)),
        ),
        compiler_params=pltpu.CompilerParams(
            # Batch-block axis is embarrassingly parallel (megacore / v7x dual-TC sharding).
            dimension_semantics=("parallel",),
            # TODO(synk): for large D on v5e raise vmem_limit_bytes (default scoped VMEM 16 MiB);
            # for long sequences on v7x (64 MiB VMEM) switch to flash-style KV tiling.
        ),
    )(x, bias, ln_g, ln_b, wqkv_t, bqkv, wo_t, bo)


def init_params(key, input_dim):
    """Deterministic parameter init matching nn.MultiheadAttention / nn.LayerNorm shapes."""
    k1, k2 = jax.random.split(key)
    D = input_dim
    bound = 1.0 / math.sqrt(D)
    return {
        'ln_gamma': jnp.ones((D,), jnp.float32),
        'ln_beta': jnp.zeros((D,), jnp.float32),
        'in_proj_weight': jax.random.uniform(k1, (3 * D, D), jnp.float32, -bound, bound),
        'in_proj_bias': jnp.zeros((3 * D,), jnp.float32),
        'out_proj_weight': jax.random.uniform(k2, (D, D), jnp.float32, -bound, bound),
        'out_proj_bias': jnp.zeros((D,), jnp.float32),
    }


def _reference(x, is_pad, params, num_heads):
    """Pure-JAX f32 reference of the PyTorch forward (eval mode)."""
    B, T, D = x.shape
    H = num_heads
    hd = D // H
    mean = x.mean(-1, keepdims=True)
    var = ((x - mean) ** 2).mean(-1, keepdims=True)
    xn = (x - mean) / jnp.sqrt(var + 1e-5) * params['ln_gamma'] + params['ln_beta']
    qkv = xn @ params['in_proj_weight'].T + params['in_proj_bias']
    q, k, v = jnp.split(qkv, 3, axis=-1)
    q = q.reshape(B, T, H, hd).transpose(0, 2, 1, 3) * (1.0 / math.sqrt(hd))
    k = k.reshape(B, T, H, hd).transpose(0, 2, 1, 3)
    v = v.reshape(B, T, H, hd).transpose(0, 2, 1, 3)
    s = q @ k.transpose(0, 1, 3, 2)
    s = s + jnp.where(is_pad, -1e30, 0.0)[:, None, None, :]
    p = jax.nn.softmax(s, axis=-1)
    ctx = (p @ v).transpose(0, 2, 1, 3).reshape(B, T, D)
    return ctx @ params['out_proj_weight'].T + params['out_proj_bias'] + x


if __name__ == "__main__":
    B, T, D, H = 2, 8, 32, 4   # batch, text_len, input_dim, num_heads

    key = jax.random.PRNGKey(0)
    kx, kp = jax.random.split(key)

    x = jax.random.normal(kx, (B, T, D), jnp.float32)
    # pad the last 3 tokens of batch 0, last 1 token of batch 1 (at least one real token per row)
    is_pad = jnp.zeros((B, T), jnp.bool_)
    is_pad = is_pad.at[0, T - 3:].set(True)
    is_pad = is_pad.at[1, T - 1:].set(True)

    params = init_params(kp, D)

    out = self_attention_forward(x, is_pad, params, num_heads=H)
    jax.block_until_ready(out)
    assert out.shape == (B, T, D)

    # Loose sanity check vs f32 reference (bf16 MXU operands -> small numerical diff).
    ref = _reference(x, is_pad, params, H)
    err = float(jnp.max(jnp.abs(out - ref)))
    assert err < 0.1, f"max abs error vs reference: {err}"

    print("KERNEL_OK")
</pallas_src>

<mosaic_0001>
module attributes {stable_mosaic.version = 11 : i64} {
  func.func @_self_attention_kernel(%arg0: i32, %arg1: memref<2x8x32xf32, #tpu.memory_space<vmem>>, %arg2: memref<2x1x8xf32, #tpu.memory_space<vmem>>, %arg3: memref<1x32xf32, #tpu.memory_space<vmem>>, %arg4: memref<1x32xf32, #tpu.memory_space<vmem>>, %arg5: memref<32x96xbf16, #tpu.memory_space<vmem>>, %arg6: memref<1x96xf32, #tpu.memory_space<vmem>>, %arg7: memref<32x32xbf16, #tpu.memory_space<vmem>>, %arg8: memref<1x32xf32, #tpu.memory_space<vmem>>, %arg9: memref<2x8x32xf32, #tpu.memory_space<vmem>>) attributes {dimension_semantics = [#tpu.dimension_semantics<parallel>], iteration_bounds = array<i64: 1>, scalar_prefetch = 0 : i64, scratch_operands = 0 : i64, tpu.core_type = #tpu.core_type<tc>, window_params = [{transform_indices = @transform_0, window_bounds = array<i64: 2, 8, 32>}, {transform_indices = @transform_1, window_bounds = array<i64: 2, 1, 8>}, {pipeline_mode = #tpu.pipeline_mode<synchronous>, transform_indices = @transform_2, window_bounds = array<i64: 1, 32>}, {pipeline_mode = #tpu.pipeline_mode<synchronous>, transform_indices = @transform_3, window_bounds = array<i64: 1, 32>}, {pipeline_mode = #tpu.pipeline_mode<synchronous>, transform_indices = @transform_4, window_bounds = array<i64: 32, 96>}, {pipeline_mode = #tpu.pipeline_mode<synchronous>, transform_indices = @transform_5, window_bounds = array<i64: 1, 96>}, {pipeline_mode = #tpu.pipeline_mode<synchronous>, transform_indices = @transform_6, window_bounds = array<i64: 32, 32>}, {pipeline_mode = #tpu.pipeline_mode<synchronous>, transform_indices = @transform_7, window_bounds = array<i64: 1, 32>}, {transform_indices = @transform_8, window_bounds = array<i64: 2, 8, 32>}]} {
    %c0 = arith.constant 0 : index
    %c0_0 = arith.constant 0 : index
    %c0_1 = arith.constant 0 : index
    %0 = vector.load %arg1[%c0, %c0_0, %c0_1] : memref<2x8x32xf32, #tpu.memory_space<vmem>>, vector<2x8x32xf32>
    %1 = vector.shape_cast %0 : vector<2x8x32xf32> to vector<16x32xf32>
    %cst = arith.constant dense<0.000000e+00> : vector<16xf32>
    %2 = vector.multi_reduction <add>, %1, %cst [1] : vector<16x32xf32> to vector<16xf32>
    %3 = vector.shape_cast %2 : vector<16xf32> to vector<16x1xf32>
    %cst_2 = arith.constant 3.200000e+01 : f32
    %4 = vector.broadcast %cst_2 : f32 to vector<16x1xf32>
    %5 = arith.divf %3, %4 : vector<16x1xf32>
    %6 = vector.broadcast %5 : vector<16x1xf32> to vector<16x32xf32>
    %7 = arith.subf %1, %6 : vector<16x32xf32>
    %8 = arith.mulf %7, %7 : vector<16x32xf32>
    %cst_3 = arith.constant dense<0.000000e+00> : vector<16xf32>
    %9 = vector.multi_reduction <add>, %8, %cst_3 [1] : vector<16x32xf32> to vector<16xf32>
    %10 = vector.shape_cast %9 : vector<16xf32> to vector<16x1xf32>
    %cst_4 = arith.constant 3.200000e+01 : f32
    %11 = vector.broadcast %cst_4 : f32 to vector<16x1xf32>
    %12 = arith.divf %10, %11 : vector<16x1xf32>
    %cst_5 = arith.constant 9.99999974E-6 : f32
    %13 = vector.broadcast %cst_5 : f32 to vector<16x1xf32>
    %14 = arith.addf %12, %13 : vector<16x1xf32>
    %15 = math.rsqrt %14 : vector<16x1xf32>
    %16 = vector.broadcast %15 : vector<16x1xf32> to vector<16x32xf32>
    %17 = arith.mulf %7, %16 : vector<16x32xf32>
    %c0_6 = arith.constant 0 : index
    %c0_7 = arith.constant 0 : index
    %18 = vector.load %arg3[%c0_6, %c0_7] : memref<1x32xf32, #tpu.memory_space<vmem>>, vector<1x32xf32>
    %19 = vector.shape_cast %18 : vector<1x32xf32> to vector<32xf32>
    %20 = vector.shape_cast %19 : vector<32xf32> to vector<1x32xf32>
    %21 = vector.broadcast %20 : vector<1x32xf32> to vector<16x32xf32>
    %22 = arith.mulf %17, %21 : vector<16x32xf32>
    %c0_8 = arith.constant 0 : index
    %c0_9 = arith.constant 0 : index
    %23 = vector.load %arg4[%c0_8, %c0_9] : memref<1x32xf32, #tpu.memory_space<vmem>>, vector<1x32xf32>
    %24 = vector.shape_cast %23 : vector<1x32xf32> to vector<32xf32>
    %25 = vector.shape_cast %24 : vector<32xf32> to vector<1x32xf32>
    %26 = vector.broadcast %25 : vector<1x32xf32> to vector<16x32xf32>
    %27 = arith.addf %22, %26 : vector<16x32xf32>
    %28 = arith.truncf %27 : vector<16x32xf32> to vector<16x32xbf16>
    %c0_10 = arith.constant 0 : index
    %c0_11 = arith.constant 0 : index
    %29 = vector.load %arg5[%c0_10, %c0_11] : memref<32x96xbf16, #tpu.memory_space<vmem>>, vector<32x96xbf16>
    %cst_12 = arith.constant dense<0.000000e+00> : vector<16x96xf32>
    %30 = tpu.matmul %28, %29, %cst_12 {dimension_numbers = #tpu.dot_dimension_numbers<[1], [0], [0], [1], [0, 0, 1, 1], [], []>} : vector<16x32xbf16>, vector<32x96xbf16>, vector<16x96xf32> -> vector<16x96xf32>
    %c0_13 = arith.constant 0 : index
    %c0_14 = arith.constant 0 : index
    %31 = vector.load %arg6[%c0_13, %c0_14] : memref<1x96xf32, #tpu.memory_space<vmem>>, vector<1x96xf32>
    %32 = vector.shape_cast %31 : vector<1x96xf32> to vector<96xf32>
    %33 = vector.shape_cast %32 : vector<96xf32> to vector<1x96xf32>
    %34 = vector.broadcast %33 : vector<1x96xf32> to vector<16x96xf32>
    %35 = arith.addf %30, %34 : vector<16x96xf32>
    %36 = vector.extract_strided_slice %35 {offsets = [0, 0], sizes = [16, 32], strides = [1, 1]} : vector<16x96xf32> to vector<16x32xf32>
    %37 = vector.extract_strided_slice %35 {offsets = [0, 32], sizes = [16, 32], strides = [1, 1]} : vector<16x96xf32> to vector<16x32xf32>
    %38 = vector.extract_strided_slice %35 {offsets = [0, 64], sizes = [16, 32], strides = [1, 1]} : vector<16x96xf32> to vector<16x32xf32>
    %39 = vector.extract_strided_slice %36 {offsets = [0, 0], sizes = [8, 32], strides = [1, 1]} : vector<16x32xf32> to vector<8x32xf32>
    %40 = vector.extract_strided_slice %37 {offsets = [0, 0], sizes = [8, 32], strides = [1, 1]} : vector<16x32xf32> to vector<8x32xf32>
    %41 = vector.extract_strided_slice %38 {offsets = [0, 0], sizes = [8, 32], strides = [1, 1]} : vector<16x32xf32> to vector<8x32xf32>
    %c0_15 = arith.constant 0 : index
    %c0_16 = arith.constant 0 : index
    %c0_17 = arith.constant 0 : index
    %42 = vector.load %arg2[%c0_15, %c0_16, %c0_17] : memref<2x1x8xf32, #tpu.memory_space<vmem>>, vector<1x1x8xf32>
    %43 = vector.shape_cast %42 : vector<1x1x8xf32> to vector<1x8xf32>
    %44 = vector.extract_strided_slice %39 {offsets = [0, 0], sizes = [8, 8], strides = [1, 1]} : vector<8x32xf32> to vector<8x8xf32>
    %45 = arith.truncf %44 : vector<8x8xf32> to vector<8x8xbf16>
    %46 = vector.extract_strided_slice %40 {offsets = [0, 0], sizes = [8, 8], strides = [1, 1]} : vector<8x32xf32> to vector<8x8xf32>
    %47 = arith.truncf %46 : vector<8x8xf32> to vector<8x8xbf16>
    %48 = vector.extract_strided_slice %41 {offsets = [0, 0], sizes = [8, 8], strides = [1, 1]} : vector<8x32xf32> to vector<8x8xf32>
    %49 = arith.truncf %48 : vector<8x8xf32> to vector<8x8xbf16>
    %cst_18 = arith.constant dense<0.000000e+00> : vector<8x8xf32>
    %50 = tpu.matmul %45, %47, %cst_18 {dimension_numbers = #tpu.dot_dimension_numbers<[1], [1], [0], [0], [0, 0, 1, 0], [], []>} : vector<8x8xbf16>, vector<8x8xbf16>, vector<8x8xf32> -> vector<8x8xf32>
    %51 = vector.broadcast %43 : vector<1x8xf32> to vector<8x8xf32>
    %52 = arith.addf %50, %51 : vector<8x8xf32>
    %cst_19 = arith.constant dense<0xFF800000> : vector<8xf32>
    %53 = vector.multi_reduction <maximumf>, %52, %cst_19 [1] : vector<8x8xf32> to vector<8xf32>
    %54 = vector.shape_cast %53 : vector<8xf32> to vector<8x1xf32>
    %55 = vector.broadcast %54 : vector<8x1xf32> to vector<8x8xf32>
    %56 = arith.subf %52, %55 : vector<8x8xf32>
    %57 = math.exp %56 : vector<8x8xf32>
    %cst_20 = arith.constant dense<0.000000e+00> : vector<8xf32>
    %58 = vector.multi_reduction <add>, %57, %cst_20 [1] : vector<8x8xf32> to vector<8xf32>
    %59 = vector.shape_cast %58 : vector<8xf32> to vector<8x1xf32>
    %60 = tpu.reciprocal %59 {approx = true} : vector<8x1xf32> -> vector<8x1xf32>
    %61 = vector.broadcast %60 : vector<8x1xf32> to vector<8x8xf32>
    %62 = arith.mulf %57, %61 : vector<8x8xf32>
    %63 = arith.truncf %62 : vector<8x8xf32> to vector<8x8xbf16>
    %cst_21 = arith.constant dense<0.000000e+00> : vector<8x8xf32>
    %64 = tpu.matmul %63, %49, %cst_21 {dimension_numbers = #tpu.dot_dimension_numbers<[1], [0], [0], [1], [0, 0, 1, 1], [], []>} : vector<8x8xbf16>, vector<8x8xbf16>, vector<8x8xf32> -> vector<8x8xf32>
    %65 = vector.extract_strided_slice %39 {offsets = [0, 8], sizes = [8, 8], strides = [1, 1]} : vector<8x32xf32> to vector<8x8xf32>
    %66 = arith.truncf %65 : vector<8x8xf32> to vector<8x8xbf16>
    %67 = vector.extract_strided_slice %40 {offsets = [0, 8], sizes = [8, 8], strides = [1, 1]} : vector<8x32xf32> to vector<8x8xf32>
    %68 = arith.truncf %67 : vector<8x8xf32> to vector<8x8xbf16>
    %69 = vector.extract_strided_slice %41 {offsets = [0, 8], sizes = [8, 8], strides = [1, 1]} : vector<8x32xf32> to vector<8x8xf32>
    %70 = arith.truncf %69 : vector<8x8xf32> to vector<8x8xbf16>
    %cst_22 = arith.constant dense<0.000000e+00> : vector<8x8xf32>
    %71 = tpu.matmul %66, %68, %cst_22 {dimension_numbers = #tpu.dot_dimension_numbers<[1], [1], [0], [0], [0, 0, 1, 0], [], []>} : vector<8x8xbf16>, vector<8x8xbf16>, vector<8x8xf32> -> vector<8x8xf32>
    %72 = vector.broadcast %43 : vector<1x8xf32> to vector<8x8xf32>
    %73 = arith.addf %71, %72 : vector<8x8xf32>
    %cst_23 = arith.constant dense<0xFF800000> : vector<8xf32>
    %74 = vector.multi_reduction <maximumf>, %73, %cst_23 [1] : vector<8x8xf32> to vector<8xf32>
    %75 = vector.shape_cast %74 : vector<8xf32> to vector<8x1xf32>
    %76 = vector.broadcast %75 : vector<8x1xf32> to vector<8x8xf32>
    %77 = arith.subf %73, %76 : vector<8x8xf32>
    %78 = math.exp %77 : vector<8x8xf32>
    %cst_24 = arith.constant dense<0.000000e+00> : vector<8xf32>
    %79 = vector.multi_reduction <add>, %78, %cst_24 [1] : vector<8x8xf32> to vector<8xf32>
    %80 = vector.shape_cast %79 : vector<8xf32> to vector<8x1xf32>
    %81 = tpu.reciprocal %80 {approx = true} : vector<8x1xf32> -> vector<8x1xf32>
    %82 = vector.broadcast %81 : vector<8x1xf32> to vector<8x8xf32>
    %83 = arith.mulf %78, %82 : vector<8x8xf32>
    %84 = arith.truncf %83 : vector<8x8xf32> to vector<8x8xbf16>
    %cst_25 = arith.constant dense<0.000000e+00> : vector<8x8xf32>
    %85 = tpu.matmul %84, %70, %cst_25 {dimension_numbers = #tpu.dot_dimension_numbers<[1], [0], [0], [1], [0, 0, 1, 1], [], []>} : vector<8x8xbf16>, vector<8x8xbf16>, vector<8x8xf32> -> vector<8x8xf32>
    %86 = vector.extract_strided_slice %39 {offsets = [0, 16], sizes = [8, 8], strides = [1, 1]} : vector<8x32xf32> to vector<8x8xf32>
    %87 = arith.truncf %86 : vector<8x8xf32> to vector<8x8xbf16>
    %88 = vector.extract_strided_slice %40 {offsets = [0, 16], sizes = [8, 8], strides = [1, 1]} : vector<8x32xf32> to vector<8x8xf32>
    %89 = arith.truncf %88 : vector<8x8xf32> to vector<8x8xbf16>
    %90 = vector.extract_strided_slice %41 {offsets = [0, 16], sizes = [8, 8], strides = [1, 1]} : vector<8x32xf32> to vector<8x8xf32>
    %91 = arith.truncf %90 : vector<8x8xf32> to vector<8x8xbf16>
    %cst_26 = arith.constant dense<0.000000e+00> : vector<8x8xf32>
    %92 = tpu.matmul %87, %89, %cst_26 {dimension_numbers = #tpu.dot_dimension_numbers<[1], [1], [0], [0], [0, 0, 1, 0], [], []>} : vector<8x8xbf16>, vector<8x8xbf16>, vector<8x8xf32> -> vector<8x8xf32>
    %93 = vector.broadcast %43 : vector<1x8xf32> to vector<8x8xf32>
    %94 = arith.addf %92, %93 : vector<8x8xf32>
    %cst_27 = arith.constant dense<0xFF800000> : vector<8xf32>
    %95 = vector.multi_reduction <maximumf>, %94, %cst_27 [1] : vector<8x8xf32> to vector<8xf32>
    %96 = vector.shape_cast %95 : vector<8xf32> to vector<8x1xf32>
    %97 = vector.broadcast %96 : vector<8x1xf32> to vector<8x8xf32>
    %98 = arith.subf %94, %97 : vector<8x8xf32>
    %99 = math.exp %98 : vector<8x8xf32>
    %cst_28 = arith.constant dense<0.000000e+00> : vector<8xf32>
    %100 = vector.multi_reduction <add>, %99, %cst_28 [1] : vector<8x8xf32> to vector<8xf32>
    %101 = vector.shape_cast %100 : vector<8xf32> to vector<8x1xf32>
    %102 = tpu.reciprocal %101 {approx = true} : vector<8x1xf32> -> vector<8x1xf32>
    %103 = vector.broadcast %102 : vector<8x1xf32> to vector<8x8xf32>
    %104 = arith.mulf %99, %103 : vector<8x8xf32>
    %105 = arith.truncf %104 : vector<8x8xf32> to vector<8x8xbf16>
    %cst_29 = arith.constant dense<0.000000e+00> : vector<8x8xf32>
    %106 = tpu.matmul %105, %91, %cst_29 {dimension_numbers = #tpu.dot_dimension_numbers<[1], [0], [0], [1], [0, 0, 1, 1], [], []>} : vector<8x8xbf16>, vector<8x8xbf16>, vector<8x8xf32> -> vector<8x8xf32>
    %107 = vector.extract_strided_slice %39 {offsets = [0, 24], sizes = [8, 8], strides = [1, 1]} : vector<8x32xf32> to vector<8x8xf32>
    %108 = arith.truncf %107 : vector<8x8xf32> to vector<8x8xbf16>
    %109 = vector.extract_strided_slice %40 {offsets = [0, 24], sizes = [8, 8], strides = [1, 1]} : vector<8x32xf32> to vector<8x8xf32>
    %110 = arith.truncf %109 : vector<8x8xf32> to vector<8x8xbf16>
    %111 = vector.extract_strided_slice %41 {offsets = [0, 24], sizes = [8, 8], strides = [1, 1]} : vector<8x32xf32> to vector<8x8xf32>
    %112 = arith.truncf %111 : vector<8x8xf32> to vector<8x8xbf16>
    %cst_30 = arith.constant dense<0.000000e+00> : vector<8x8xf32>
    %113 = tpu.matmul %108, %110, %cst_30 {dimension_numbers = #tpu.dot_dimension_numbers<[1], [1], [0], [0], [0, 0, 1, 0], [], []>} : vector<8x8xbf16>, vector<8x8xbf16>, vector<8x8xf32> -> vector<8x8xf32>
    %114 = vector.broadcast %43 : vector<1x8xf32> to vector<8x8xf32>
    %115 = arith.addf %113, %114 : vector<8x8xf32>
    %cst_31 = arith.constant dense<0xFF800000> : vector<8xf32>
    %116 = vector.multi_reduction <maximumf>, %115, %cst_31 [1] : vector<8x8xf32> to vector<8xf32>
    %117 = vector.shape_cast %116 : vector<8xf32> to vector<8x1xf32>
    %118 = vector.broadcast %117 : vector<8x1xf32> to vector<8x8xf32>
    %119 = arith.subf %115, %118 : vector<8x8xf32>
    %120 = math.exp %119 : vector<8x8xf32>
    %cst_32 = arith.constant dense<0.000000e+00> : vector<8xf32>
    %121 = vector.multi_reduction <add>, %120, %cst_32 [1] : vector<8x8xf32> to vector<8xf32>
    %122 = vector.shape_cast %121 : vector<8xf32> to vector<8x1xf32>
    %123 = tpu.reciprocal %122 {approx = true} : vector<8x1xf32> -> vector<8x1xf32>
    %124 = vector.broadcast %123 : vector<8x1xf32> to vector<8x8xf32>
    %125 = arith.mulf %120, %124 : vector<8x8xf32>
    %126 = arith.truncf %125 : vector<8x8xf32> to vector<8x8xbf16>
    %cst_33 = arith.constant dense<0.000000e+00> : vector<8x8xf32>
    %127 = tpu.matmul %126, %112, %cst_33 {dimension_numbers = #tpu.dot_dimension_numbers<[1], [0], [0], [1], [0, 0, 1, 1], [], []>} : vector<8x8xbf16>, vector<8x8xbf16>, vector<8x8xf32> -> vector<8x8xf32>
    %128 = tpu.concatenate %64, %85, %106, %127 in 1 : vector<8x8xf32>, vector<8x8xf32>, vector<8x8xf32>, vector<8x8xf32> -> vector<8x32xf32>
    %129 = vector.extract_strided_slice %36 {offsets = [8, 0], sizes = [8, 32], strides = [1, 1]} : vector<16x32xf32> to vector<8x32xf32>
    %130 = vector.extract_strided_slice %37 {offsets = [8, 0], sizes = [8, 32], strides = [1, 1]} : vector<16x32xf32> to vector<8x32xf32>
    %131 = vector.extract_strided_slice %38 {offsets = [8, 0], sizes = [8, 32], strides = [1, 1]} : vector<16x32xf32> to vector<8x32xf32>
    %c1 = arith.constant 1 : index
    %c0_34 = arith.constant 0 : index
    %c0_35 = arith.constant 0 : index
    %132 = vector.load %arg2[%c1, %c0_34, %c0_35] : memref<2x1x8xf32, #tpu.memory_space<vmem>>, vector<1x1x8xf32>
    %133 = vector.shape_cast %132 : vector<1x1x8xf32> to vector<1x8xf32>
    %134 = vector.extract_strided_slice %129 {offsets = [0, 0], sizes = [8, 8], strides = [1, 1]} : vector<8x32xf32> to vector<8x8xf32>
    %135 = arith.truncf %134 : vector<8x8xf32> to vector<8x8xbf16>
    %136 = vector.extract_strided_slice %130 {offsets = [0, 0], sizes = [8, 8], strides = [1, 1]} : vector<8x32xf32> to vector<8x8xf32>
    %137 = arith.truncf %136 : vector<8x8xf32> to vector<8x8xbf16>
    %138 = vector.extract_strided_slice %131 {offsets = [0, 0], sizes = [8, 8], strides = [1, 1]} : vector<8x32xf32> to vector<8x8xf32>
    %139 = arith.truncf %138 : vector<8x8xf32> to vector<8x8xbf16>
    %cst_36 = arith.constant dense<0.000000e+00> : vector<8x8xf32>
    %140 = tpu.matmul %135, %137, %cst_36 {dimension_numbers = #tpu.dot_dimension_numbers<[1], [1], [0], [0], [0, 0, 1, 0], [], []>} : vector<8x8xbf16>, vector<8x8xbf16>, vector<8x8xf32> -> vector<8x8xf32>
    %141 = vector.broadcast %133 : vector<1x8xf32> to vector<8x8xf32>
    %142 = arith.addf %140, %141 : vector<8x8xf32>
    %cst_37 = arith.constant dense<0xFF800000> : vector<8xf32>
    %143 = vector.multi_reduction <maximumf>, %142, %cst_37 [1] : vector<8x8xf32> to vector<8xf32>
    %144 = vector.shape_cast %143 : vector<8xf32> to vector<8x1xf32>
    %145 = vector.broadcast %144 : vector<8x1xf32> to vector<8x8xf32>
    %146 = arith.subf %142, %145 : vector<8x8xf32>
    %147 = math.exp %146 : vector<8x8xf32>
    %cst_38 = arith.constant dense<0.000000e+00> : vector<8xf32>
    %148 = vector.multi_reduction <add>, %147, %cst_38 [1] : vector<8x8xf32> to vector<8xf32>
    %149 = vector.shape_cast %148 : vector<8xf32> to vector<8x1xf32>
    %150 = tpu.reciprocal %149 {approx = true} : vector<8x1xf32> -> vector<8x1xf32>
    %151 = vector.broadcast %150 : vector<8x1xf32> to vector<8x8xf32>
    %152 = arith.mulf %147, %151 : vector<8x8xf32>
    %153 = arith.truncf %152 : vector<8x8xf32> to vector<8x8xbf16>
    %cst_39 = arith.constant dense<0.000000e+00> : vector<8x8xf32>
    %154 = tpu.matmul %153, %139, %cst_39 {dimension_numbers = #tpu.dot_dimension_numbers<[1], [0], [0], [1], [0, 0, 1, 1], [], []>} : vector<8x8xbf16>, vector<8x8xbf16>, vector<8x8xf32> -> vector<8x8xf32>
    %155 = vector.extract_strided_slice %129 {offsets = [0, 8], sizes = [8, 8], strides = [1, 1]} : vector<8x32xf32> to vector<8x8xf32>
    %156 = arith.truncf %155 : vector<8x8xf32> to vector<8x8xbf16>
    %157 = vector.extract_strided_slice %130 {offsets = [0, 8], sizes = [8, 8], strides = [1, 1]} : vector<8x32xf32> to vector<8x8xf32>
    %158 = arith.truncf %157 : vector<8x8xf32> to vector<8x8xbf16>
    %159 = vector.extract_strided_slice %131 {offsets = [0, 8], sizes = [8, 8], strides = [1, 1]} : vector<8x32xf32> to vector<8x8xf32>
    %160 = arith.truncf %159 : vector<8x8xf32> to vector<8x8xbf16>
    %cst_40 = arith.constant dense<0.000000e+00> : vector<8x8xf32>
    %161 = tpu.matmul %156, %158, %cst_40 {dimension_numbers = #tpu.dot_dimension_numbers<[1], [1], [0], [0], [0, 0, 1, 0], [], []>} : vector<8x8xbf16>, vector<8x8xbf16>, vector<8x8xf32> -> vector<8x8xf32>
    %162 = vector.broadcast %133 : vector<1x8xf32> to vector<8x8xf32>
    %163 = arith.addf %161, %162 : vector<8x8xf32>
    %cst_41 = arith.constant dense<0xFF800000> : vector<8xf32>
    %164 = vector.multi_reduction <maximumf>, %163, %cst_41 [1] : vector<8x8xf32> to vector<8xf32>
    %165 = vector.shape_cast %164 : vector<8xf32> to vector<8x1xf32>
    %166 = vector.broadcast %165 : vector<8x1xf32> to vector<8x8xf32>
    %167 = arith.subf %163, %166 : vector<8x8xf32>
    %168 = math.exp %167 : vector<8x8xf32>
    %cst_42 = arith.constant dense<0.000000e+00> : vector<8xf32>
    %169 = vector.multi_reduction <add>, %168, %cst_42 [1] : vector<8x8xf32> to vector<8xf32>
    %170 = vector.shape_cast %169 : vector<8xf32> to vector<8x1xf32>
    %171 = tpu.reciprocal %170 {approx = true} : vector<8x1xf32> -> vector<8x1xf32>
    %172 = vector.broadcast %171 : vector<8x1xf32> to vector<8x8xf32>
    %173 = arith.mulf %168, %172 : vector<8x8xf32>
    %174 = arith.truncf %173 : vector<8x8xf32> to vector<8x8xbf16>
    %cst_43 = arith.constant dense<0.000000e+00> : vector<8x8xf32>
    %175 = tpu.matmul %174, %160, %cst_43 {dimension_numbers = #tpu.dot_dimension_numbers<[1], [0], [0], [1], [0, 0, 1, 1], [], []>} : vector<8x8xbf16>, vector<8x8xbf16>, vector<8x8xf32> -> vector<8x8xf32>
    %176 = vector.extract_strided_slice %129 {offsets = [0, 16], sizes = [8, 8], strides = [1, 1]} : vector<8x32xf32> to vector<8x8xf32>
    %177 = arith.truncf %176 : vector<8x8xf32> to vector<8x8xbf16>
    %178 = vector.extract_strided_slice %130 {offsets = [0, 16], sizes = [8, 8], strides = [1, 1]} : vector<8x32xf32> to vector<8x8xf32>
    %179 = arith.truncf %178 : vector<8x8xf32> to vector<8x8xbf16>
    %180 = vector.extract_strided_slice %131 {offsets = [0, 16], sizes = [8, 8], strides = [1, 1]} : vector<8x32xf32> to vector<8x8xf32>
    %181 = arith.truncf %180 : vector<8x8xf32> to vector<8x8xbf16>
    %cst_44 = arith.constant dense<0.000000e+00> : vector<8x8xf32>
    %182 = tpu.matmul %177, %179, %cst_44 {dimension_numbers = #tpu.dot_dimension_numbers<[1], [1], [0], [0], [0, 0, 1, 0], [], []>} : vector<8x8xbf16>, vector<8x8xbf16>, vector<8x8xf32> -> vector<8x8xf32>
    %183 = vector.broadcast %133 : vector<1x8xf32> to vector<8x8xf32>
    %184 = arith.addf %182, %183 : vector<8x8xf32>
    %cst_45 = arith.constant dense<0xFF800000> : vector<8xf32>
    %185 = vector.multi_reduction <maximumf>, %184, %cst_45 [1] : vector<8x8xf32> to vector<8xf32>
    %186 = vector.shape_cast %185 : vector<8xf32> to vector<8x1xf32>
    %187 = vector.broadcast %186 : vector<8x1xf32> to vector<8x8xf32>
    %188 = arith.subf %184, %187 : vector<8x8xf32>
    %189 = math.exp %188 : vector<8x8xf32>
    %cst_46 = arith.constant dense<0.000000e+00> : vector<8xf32>
    %190 = vector.multi_reduction <add>, %189, %cst_46 [1] : vector<8x8xf32> to vector<8xf32>
    %191 = vector.shape_cast %190 : vector<8xf32> to vector<8x1xf32>
    %192 = tpu.reciprocal %191 {approx = true} : vector<8x1xf32> -> vector<8x1xf32>
    %193 = vector.broadcast %192 : vector<8x1xf32> to vector<8x8xf32>
    %194 = arith.mulf %189, %193 : vector<8x8xf32>
    %195 = arith.truncf %194 : vector<8x8xf32> to vector<8x8xbf16>
    %cst_47 = arith.constant dense<0.000000e+00> : vector<8x8xf32>
    %196 = tpu.matmul %195, %181, %cst_47 {dimension_numbers = #tpu.dot_dimension_numbers<[1], [0], [0], [1], [0, 0, 1, 1], [], []>} : vector<8x8xbf16>, vector<8x8xbf16>, vector<8x8xf32> -> vector<8x8xf32>
    %197 = vector.extract_strided_slice %129 {offsets = [0, 24], sizes = [8, 8], strides = [1, 1]} : vector<8x32xf32> to vector<8x8xf32>
    %198 = arith.truncf %197 : vector<8x8xf32> to vector<8x8xbf16>
    %199 = vector.extract_strided_slice %130 {offsets = [0, 24], sizes = [8, 8], strides = [1, 1]} : vector<8x32xf32> to vector<8x8xf32>
    %200 = arith.truncf %199 : vector<8x8xf32> to vector<8x8xbf16>
    %201 = vector.extract_strided_slice %131 {offsets = [0, 24], sizes = [8, 8], strides = [1, 1]} : vector<8x32xf32> to vector<8x8xf32>
    %202 = arith.truncf %201 : vector<8x8xf32> to vector<8x8xbf16>
    %cst_48 = arith.constant dense<0.000000e+00> : vector<8x8xf32>
    %203 = tpu.matmul %198, %200, %cst_48 {dimension_numbers = #tpu.dot_dimension_numbers<[1], [1], [0], [0], [0, 0, 1, 0], [], []>} : vector<8x8xbf16>, vector<8x8xbf16>, vector<8x8xf32> -> vector<8x8xf32>
    %204 = vector.broadcast %133 : vector<1x8xf32> to vector<8x8xf32>
    %205 = arith.addf %203, %204 : vector<8x8xf32>
    %cst_49 = arith.constant dense<0xFF800000> : vector<8xf32>
    %206 = vector.multi_reduction <maximumf>, %205, %cst_49 [1] : vector<8x8xf32> to vector<8xf32>
    %207 = vector.shape_cast %206 : vector<8xf32> to vector<8x1xf32>
    %208 = vector.broadcast %207 : vector<8x1xf32> to vector<8x8xf32>
    %209 = arith.subf %205, %208 : vector<8x8xf32>
    %210 = math.exp %209 : vector<8x8xf32>
    %cst_50 = arith.constant dense<0.000000e+00> : vector<8xf32>
    %211 = vector.multi_reduction <add>, %210, %cst_50 [1] : vector<8x8xf32> to vector<8xf32>
    %212 = vector.shape_cast %211 : vector<8xf32> to vector<8x1xf32>
    %213 = tpu.reciprocal %212 {approx = true} : vector<8x1xf32> -> vector<8x1xf32>
    %214 = vector.broadcast %213 : vector<8x1xf32> to vector<8x8xf32>
    %215 = arith.mulf %210, %214 : vector<8x8xf32>
    %216 = arith.truncf %215 : vector<8x8xf32> to vector<8x8xbf16>
    %cst_51 = arith.constant dense<0.000000e+00> : vector<8x8xf32>
    %217 = tpu.matmul %216, %202, %cst_51 {dimension_numbers = #tpu.dot_dimension_numbers<[1], [0], [0], [1], [0, 0, 1, 1], [], []>} : vector<8x8xbf16>, vector<8x8xbf16>, vector<8x8xf32> -> vector<8x8xf32>
    %218 = tpu.concatenate %154, %175, %196, %217 in 1 : vector<8x8xf32>, vector<8x8xf32>, vector<8x8xf32>, vector<8x8xf32> -> vector<8x32xf32>
    %219 = tpu.concatenate %128, %218 in 0 : vector<8x32xf32>, vector<8x32xf32> -> vector<16x32xf32>
    %220 = arith.truncf %219 : vector<16x32xf32> to vector<16x32xbf16>
    %c0_52 = arith.constant 0 : index
    %c0_53 = arith.constant 0 : index
    %221 = vector.load %arg7[%c0_52, %c0_53] : memref<32x32xbf16, #tpu.memory_space<vmem>>, vector<32x32xbf16>
    %cst_54 = arith.constant dense<0.000000e+00> : vector<16x32xf32>
    %222 = tpu.matmul %220, %221, %cst_54 {dimension_numbers = #tpu.dot_dimension_numbers<[1], [0], [0], [1], [0, 0, 1, 1], [], []>} : vector<16x32xbf16>, vector<32x32xbf16>, vector<16x32xf32> -> vector<16x32xf32>
    %c0_55 = arith.constant 0 : index
    %c0_56 = arith.constant 0 : index
    %223 = vector.load %arg8[%c0_55, %c0_56] : memref<1x32xf32, #tpu.memory_space<vmem>>, vector<1x32xf32>
    %224 = vector.shape_cast %223 : vector<1x32xf32> to vector<32xf32>
    %225 = vector.shape_cast %224 : vector<32xf32> to vector<1x32xf32>
    %226 = vector.broadcast %225 : vector<1x32xf32> to vector<16x32xf32>
    %227 = arith.addf %222, %226 : vector<16x32xf32>
    %228 = arith.addf %227, %1 : vector<16x32xf32>
    %229 = vector.shape_cast %228 : vector<16x32xf32> to vector<2x8x32xf32>
    %c0_57 = arith.constant 0 : index
    %c0_58 = arith.constant 0 : index
    %c0_59 = arith.constant 0 : index
    %230 = vector.load %arg9[%c0_57, %c0_58, %c0_59] : memref<2x8x32xf32, #tpu.memory_space<vmem>>, vector<2x8x32xf32>
    tpu.vector_store %arg9[%c0_57, %c0_58, %c0_59], %229 {strides = array<i32>} : memref<2x8x32xf32, #tpu.memory_space<vmem>>, vector<2x8x32xf32>,
    return
  }
  func.func @transform_0(%arg0: i32) -> (i32, i32, i32) {
    %c0_i32 = arith.constant 0 : i32
    %c0_i32_0 = arith.constant 0 : i32
    %c0_i32_1 = arith.constant 0 : i32
    return %arg0, %c0_i32, %c0_i32_0 : i32, i32, i32
  }
  func.func @transform_1(%arg0: i32) -> (i32, i32, i32) {
    %c0_i32 = arith.constant 0 : i32
    %c0_i32_0 = arith.constant 0 : i32
    %c0_i32_1 = arith.constant 0 : i32
    return %arg0, %c0_i32, %c0_i32_0 : i32, i32, i32
  }
  func.func @transform_2(%arg0: i32) -> (i32, i32) {
    %c0_i32 = arith.constant 0 : i32
    %c0_i32_0 = arith.constant 0 : i32
    %c0_i32_1 = arith.constant 0 : i32
    return %c0_i32, %c0_i32_0 : i32, i32
  }
  func.func @transform_3(%arg0: i32) -> (i32, i32) {
    %c0_i32 = arith.constant 0 : i32
    %c0_i32_0 = arith.constant 0 : i32
    %c0_i32_1 = arith.constant 0 : i32
    return %c0_i32, %c0_i32_0 : i32, i32
  }
  func.func @transform_4(%arg0: i32) -> (i32, i32) {
    %c0_i32 = arith.constant 0 : i32
    %c0_i32_0 = arith.constant 0 : i32
    %c0_i32_1 = arith.constant 0 : i32
    return %c0_i32, %c0_i32_0 : i32, i32
  }
  func.func @transform_5(%arg0: i32) -> (i32, i32) {
    %c0_i32 = arith.constant 0 : i32
    %c0_i32_0 = arith.constant 0 : i32
    %c0_i32_1 = arith.constant 0 : i32
    return %c0_i32, %c0_i32_0 : i32, i32
  }
  func.func @transform_6(%arg0: i32) -> (i32, i32) {
    %c0_i32 = arith.constant 0 : i32
    %c0_i32_0 = arith.constant 0 : i32
    %c0_i32_1 = arith.constant 0 : i32
    return %c0_i32, %c0_i32_0 : i32, i32
  }
  func.func @transform_7(%arg0: i32) -> (i32, i32) {
    %c0_i32 = arith.constant 0 : i32
    %c0_i32_0 = arith.constant 0 : i32
    %c0_i32_1 = arith.constant 0 : i32
    return %c0_i32, %c0_i32_0 : i32, i32
  }
  func.func @transform_8(%arg0: i32) -> (i32, i32, i32) {
    %c0_i32 = arith.constant 0 : i32
    %c0_i32_0 = arith.constant 0 : i32
    %c0_i32_1 = arith.constant 0 : i32
    return %arg0, %c0_i32, %c0_i32_0 : i32, i32, i32
  }
}

</mosaic_0001>

<llo_original>
// kernel: tpu_custom_call.1
$region0: #{tpu_custom_call.1}
  #allocation0 [shape = 'u32[]', space=smem, size = 0x4, offset = 0x4, fixed_abs, tag = 'smem constant byte address 0x4 - core index']
  #allocation1 [shape = 'u32[144,128]{1,0:T(1,128)}', space=vmem, size = 0x12000, scoped, tag = 'internal scratch']
  %s0 = inlined_call_operand.hbm [shape: f32[2,8,32], index: 0, kind: input, shape index: {}]
  %s1 = inlined_call_operand.vmem [shape: f32[2,1,8], index: 1, kind: input, shape index: {}]
  %s2 = inlined_call_operand.vmem [shape: f32[1,32], index: 2, kind: input, shape index: {}]
  %s3 = inlined_call_operand.vmem [shape: f32[1,32], index: 3, kind: input, shape index: {}]
  %s4 = inlined_call_operand.hbm [shape: bf16[32,96], index: 4, kind: input, shape index: {}]
  %s5 = inlined_call_operand.vmem [shape: f32[1,96], index: 5, kind: input, shape index: {}]
  %s6 = inlined_call_operand.vmem [shape: bf16[32,32], index: 6, kind: input, shape index: {}]
  %s7 = inlined_call_operand.vmem [shape: f32[1,32], index: 7, kind: input, shape index: {}]
  %s8 = inlined_call_operand.hbm [shape: f32[2,8,32], index: 8, kind: output, shape index: {}]
  %s9 = sld [smem:[#allocation0]]
  $region50: #{tpu_custom_call.1} parent=0
    _
  %s11 = ssub.s32 1, %s9
  %s12 = scalar_select 0, %s11, %s9
  $region1: #{tpu_custom_call.1} parent=0
    #allocation2 [shape = 'u8[8192]{0}', space=vmem, size = 0x2000, scoped, tag = 'input window, operand 0, single buffered']
    #allocation3 [shape = 's32[1]{0}', space=sflag, size = 0x4, scoped, tag = 'scoped memory for tpu_custom_call.1']
    #allocation4 [shape = 's32[1]{0}', space=sflag, size = 0x4, scoped, tag = 'scoped memory for tpu_custom_call.1']
    #allocation5 [shape = 'u8[8192]{0}', space=vmem, size = 0x2000, scoped, tag = 'input window, operand 4, single buffered']
    #allocation6 [shape = 's32[1]{0}', space=sflag, size = 0x4, scoped, tag = 'scoped memory for tpu_custom_call.1']
    #allocation7 [shape = 'u8[8192]{0}', space=vmem, size = 0x2000, scoped, tag = 'output window, operand 0, single buffered']
    %13 = vsyncpa [#allocation3], 0
    %14 = vsyncpa [#allocation6], 0
    %15 = vsyncpa [#allocation4], 0
    // Predicated region
    $region2: #{tpu_custom_call.1} parent=1 // pred_check
      _
    $region3: #{tpu_custom_call.1} parent=1 // pred_check_branch
      %17 = sbr.rel (0) target = $region5
    $region4: #{tpu_custom_call.1} parent=1 // pred_region
      %s19 = ssub.s32 256, 256
      %20 = vsyncadd [#allocation3], %s19
      %s21 = sshll.u32 [#allocation2], 4
      %s22 = int_to_ptr.vmem [resolvable:$true] %s21
      %27 = dma.hbm_to_vmem [thread:$0]  %s0, 256, %s22, [#allocation3], 128, 128, 8
    $region5: #{tpu_custom_call.1} parent=1 // pred_fallthru
      _
    // Predicated region
    $region6: #{tpu_custom_call.1} parent=1 // pred_check
      _
    $region7: #{tpu_custom_call.1} parent=1 // pred_check_branch
      %29 = sbr.rel (0) target = $region9
    $region8: #{tpu_custom_call.1} parent=1 // pred_region
      _
    $region9: #{tpu_custom_call.1} parent=1 // pred_fallthru
      _
    // Predicated region
    $region10: #{tpu_custom_call.1} parent=1 // pred_check
      _
    $region11: #{tpu_custom_call.1} parent=1 // pred_check_branch
      %31 = sbr.rel (0) target = $region13
    $region12: #{tpu_custom_call.1} parent=1 // pred_region
      _
    $region13: #{tpu_custom_call.1} parent=1 // pred_fallthru
      _
    // Predicated region
    $region14: #{tpu_custom_call.1} parent=1 // pred_check
      _
    $region15: #{tpu_custom_call.1} parent=1 // pred_check_branch
      %33 = sbr.rel (0) target = $region17
    $region16: #{tpu_custom_call.1} parent=1 // pred_region
      _
    $region17: #{tpu_custom_call.1} parent=1 // pred_fallthru
      _
    // Predicated region
    $region18: #{tpu_custom_call.1} parent=1 // pred_check
      _
    $region19: #{tpu_custom_call.1} parent=1 // pred_check_branch
      %35 = sbr.rel (0) target = $region21
    $region20: #{tpu_custom_call.1} parent=1 // pred_region
      %s37 = ssub.s32 256, 256
      %38 = vsyncadd [#allocation6], %s37
      %s39 = sshll.u32 [#allocation5], 4
      %s40 = int_to_ptr.vmem [resolvable:$true] %s39
      %45 = dma.hbm_to_vmem [thread:$0]  %s4, 256, %s40, [#allocation6], 64, 64, 4
    $region21: #{tpu_custom_call.1} parent=1 // pred_fallthru
      _
    // Predicated region
    $region22: #{tpu_custom_call.1} parent=1 // pred_check
      _
    $region23: #{tpu_custom_call.1} parent=1 // pred_check_branch
      %47 = sbr.rel (0) target = $region25
    $region24: #{tpu_custom_call.1} parent=1 // pred_region
      _
    $region25: #{tpu_custom_call.1} parent=1 // pred_fallthru
      _
    // Predicated region
    $region26: #{tpu_custom_call.1} parent=1 // pred_check
      _
    $region27: #{tpu_custom_call.1} parent=1 // pred_check_branch
      %49 = sbr.rel (0) target = $region29
    $region28: #{tpu_custom_call.1} parent=1 // pred_region
      _
    $region29: #{tpu_custom_call.1} parent=1 // pred_fallthru
      _
    // Predicated region
    $region30: #{tpu_custom_call.1} parent=1 // pred_check
      _
    $region31: #{tpu_custom_call.1} parent=1 // pred_check_branch
      %51 = sbr.rel (0) target = $region33
    $region32: #{tpu_custom_call.1} parent=1 // pred_region
      _
    $region33: #{tpu_custom_call.1} parent=1 // pred_fallthru
      _
    // Predicated region
    $region34: #{tpu_custom_call.1} parent=1 // pred_check
      _
    $region35: #{tpu_custom_call.1} parent=1 // pred_check_branch
      %53 = sbr.rel (0) target = $region37
    $region36: #{tpu_custom_call.1} parent=1 // pred_region
      %54 = dma.done [#allocation3], 256
    $region37: #{tpu_custom_call.1} parent=1 // pred_fallthru
      _
    // Predicated region
    $region38: #{tpu_custom_call.1} parent=1 // pred_check
      _
    $region39: #{tpu_custom_call.1} parent=1 // pred_check_branch
      %56 = sbr.rel (0) target = $region41
    $region40: #{tpu_custom_call.1} parent=1 // pred_region
      %57 = dma.done [#allocation6], 256
    $region41: #{tpu_custom_call.1} parent=1 // pred_fallthru
      _
    %v59 = vld [vmem:[#allocation2] sm:$0xff]
    %v60 = vld [vmem:[#allocation2 + $0x8] sm:$0xff]
    %vm61 = vcmask 261120
    %v62 = vsel %vm61, %v59, 0.0
    %63 = vadd.xlane.f32.xlu0 %v62
    %v64 = vpop.xlane.xlu0 %63
    %v65 = vsel %vm61, %v60, 0.0
    %66 = vadd.xlane.f32.xlu0 %v65
    %v67 = vpop.xlane.xlu0 %66
    %v68 = vrcp.pop 32.0
    %v69 = vmul.f32 %v64, %v68
    %v70 = vmul.f32 %v67, %v68
    %v71 = vsub.f32 %v59, %v69
    %v72 = vsub.f32 %v60, %v70
    %v73 = vmul.f32 %v71, %v71
    %v74 = vmul.f32 %v72, %v72
    %v75 = vsel %vm61, %v73, 0.0
    %76 = vadd.xlane.f32.xlu0 %v75
    %v77 = vpop.xlane.xlu0 %76
    %v78 = vsel %vm61, %v74, 0.0
    %79 = vadd.xlane.f32.xlu0 %v78
    %v80 = vpop.xlane.xlu0 %79
    %v81 = vmul.f32 %v77, %v68
    %v82 = vmul.f32 %v80, %v68
    %v83 = vadd.f32 %v81, 1e-05
    %v84 = vadd.f32 %v82, 1e-05
    %v85 = vrsqrt.pop %v83
    %v86 = vrsqrt.pop %v84
    %v87 = vmul.f32 %v71, %v85
    %v88 = vmul.f32 %v72, %v86
    %v89 = vld [vmem:[%s2] sm:$0x1]
    %v91 = vlaneseq
    %v92 = vshrl.u32 %v91, 7
    %v93 = vsub.s32 0, %v92
    %v94 = vrot.slane %v89, %v93
    %v96 = vmul.f32 %v87, %v94
    %v97 = vmul.f32 %v88, %v94
    %v98 = vld [vmem:[%s3] sm:$0x1]
    %v100 = vlaneseq
    %v101 = vshrl.u32 %v100, 7
    %v102 = vsub.s32 0, %v101
    %v103 = vrot.slane %v98, %v102
    %v105 = vadd.f32 %v96, %v103
    %v106 = vadd.f32 %v97, %v103
    %v107 = vpack.c.bf16 %v106, %v105
    %v108 = vld [vmem:[#allocation5] sm:$0xf]
    %v109 = vld [vmem:[#allocation5 + $0x4] sm:$0xf]
    %v110 = vld [vmem:[#allocation5 + $0x8] sm:$0xf]
    %v111 = vld [vmem:[#allocation5 + $0xc] sm:$0xf]
    %v112 = vld [vmem:[%s5] sm:$0x1]
    %v114 = vlaneseq
    %v115 = vshrl.u32 %v114, 7
    %v116 = vsub.s32 0, %v115
    %v117 = vrot.slane %v112, %v116
    %v123 = vunpack.c.l.b16 %v108
    %v124 = vunpack.c.l.b16 %v109
    %v125 = vunpack.c.l.b16 %v110
    %v126 = vunpack.c.l.b16 %v111
    %v127 = vpack.c.b16 %v124, %v123
    %v128 = vpack.c.b16 %v126, %v125
    %v132 = vsel %vm61, %v107, 0
    %134 = vmatprep.subr.bf16.mxu0 0
    %135 = vmatpush1.bf16.msra.mxu0 %v127
    %136 = vmatprep.subr.bf16.mxu0 0
    %137 = vmatpush1.bf16.msra.mxu0 %v128
    %138 = vmatprep.subr.bf16.mxu0 0
    %139 = vmatpush1.bf16.msra.mxu0 0
    %140 = vmatprep.subr.bf16.mxu0 0
    %141 = vmatpush1.bf16.msra.mxu0 0
    %142 = vmatprep.subr.bf16.mxu0 0
    %143 = vmatpush1.bf16.msra.mxu0 0
    %144 = vmatprep.subr.bf16.mxu0 0
    %145 = vmatpush1.bf16.msra.mxu0 0
    %146 = vmatprep.subr.bf16.mxu0 0
    %147 = vmatpush1.bf16.msra.mxu0 0
    %148 = vmatprep.subr.bf16.mxu0 0
    %149 = vmatpush1.bf16.msra.mxu0 0
    %150 = vmatprep.subr.bf16.mxu0 0
    %151 = vmatpush1.bf16.msra.mxu0 0
    %152 = vmatprep.subr.bf16.mxu0 0
    %153 = vmatpush1.bf16.msra.mxu0 0
    %154 = vmatprep.subr.bf16.mxu0 0
    %155 = vmatpush1.bf16.msra.mxu0 0
    %156 = vmatprep.subr.bf16.mxu0 0
    %157 = vmatpush1.bf16.msra.mxu0 0
    %158 = vmatprep.subr.bf16.mxu0 0
    %159 = vmatpush1.bf16.msra.mxu0 0
    %160 = vmatprep.subr.bf16.mxu0 0
    %161 = vmatpush1.bf16.msra.mxu0 0
    %162 = vmatprep.subr.bf16.mxu0 0
    %163 = vmatpush1.bf16.msra.mxu0 0
    %164 = vmatprep.subr.bf16.mxu0 0
    %165 = vmatpush1.bf16.msra.mxu0 0
    %166 = vmatprep.mubr.bf16.mxu0 0
    %167 = vmatmul.mubr.bf16.gmra.mrb[0].mxu0 %v132
    %v168 = vpop.f32.mrb[0].mxu0
    %v169 = vadd.f32 %v117, %v168
    %v170 = vpop.f32.mrb[0].mxu0
    %v171 = vpop.f32.mrb[0].mxu0
    %v172 = vadd.f32 %v117, %v171
    %v173 = vpop.f32.mrb[0].mxu0
    %174 = vdwg.mxu0
    %v175 = vld [vmem:[%s1] sm:$0x1]
    %v176 = vpack.c.bf16 %v169, %v169
    %v178 = vlaneseq
    %v179 = vshrl.u32 %v178, 7
    %v180 = vsub.s32 0, %v179
    %v181 = vrot.slane %v175, %v180
    %184 = vrot.lane.b32.xlu0 %v176, 96
    %v185 = vpop.permute.xlu0 %184
    %vm186 = vcmask 64512
    %v188 = vsel %vm186, %v176, 0
    %v191 = vsel %vm186, %v185, 0
    %193 = vmatprep.subr.bf16.mxu0 0
    %194 = vmatpush1.bf16.xpose.msra.mxu0 %v191
    %195 = vmatprep.subr.bf16.mxu0 0
    %196 = vmatpush1.bf16.xpose.msra.mxu0 0
    %197 = vmatprep.subr.bf16.mxu0 0
    %198 = vmatpush1.bf16.xpose.msra.mxu0 0
    %199 = vmatprep.subr.bf16.mxu0 0
    %200 = vmatpush1.bf16.xpose.msra.mxu0 0
    %201 = vmatprep.subr.bf16.mxu0 0
    %202 = vmatpush1.bf16.xpose.msra.mxu0 0
    %203 = vmatprep.subr.bf16.mxu0 0
    %204 = vmatpush1.bf16.xpose.msra.mxu0 0
    %205 = vmatprep.subr.bf16.mxu0 0
    %206 = vmatpush1.bf16.xpose.msra.mxu0 0
    %207 = vmatprep.subr.bf16.mxu0 0
    %208 = vmatpush1.bf16.xpose.msra.mxu0 0
    %209 = vmatprep.subr.bf16.mxu0 0
    %210 = vmatpush1.bf16.xpose.msra.mxu0 0
    %211 = vmatprep.subr.bf16.mxu0 0
    %212 = vmatpush1.bf16.xpose.msra.mxu0 0
    %213 = vmatprep.subr.bf16.mxu0 0
    %214 = vmatpush1.bf16.xpose.msra.mxu0 0
    %215 = vmatprep.subr.bf16.mxu0 0
    %216 = vmatpush1.bf16.xpose.msra.mxu0 0
    %217 = vmatprep.subr.bf16.mxu0 0
    %218 = vmatpush1.bf16.xpose.msra.mxu0 0
    %219 = vmatprep.subr.bf16.mxu0 0
    %220 = vmatpush1.bf16.xpose.msra.mxu0 0
    %221 = vmatprep.subr.bf16.mxu0 0
    %222 = vmatpush1.bf16.xpose.msra.mxu0 0
    %223 = vmatprep.subr.bf16.mxu0 0
    %224 = vmatpush1.bf16.xpose.msra.mxu0 0
    %225 = vmatprep.mubr.bf16.mxu0 0
    %226 = vmatmul.mubr.bf16.gmra.mrb[0].mxu0 %v188
    %v227 = vpop.f32.mrb[0].mxu0
    %v228 = vadd.f32 %v181, %v227
    %v229 = vpop.f32.mrb[0].mxu0
    %v230 = vpop.f32.mrb[0].mxu0
    %v231 = vpop.f32.mrb[0].mxu0
    %232 = vdwg.mxu0
    %v233 = vsel %vm186, %v228, -inf
    %234 = vmax.xlane.f32.xlu0 %v233
    %v235 = vpop.xlane.xlu0 %234
    %v236 = vsub.f32 %v228, %v235
    %v237 = vmul.f32 %v236, 1.442695
    %v238 = vpow.pop %v237
    %v239 = vsel %vm186, %v238, 0.0
    %240 = vadd.xlane.f32.xlu0 %v239
    %v241 = vpop.xlane.xlu0 %240
    %v242 = vrcp.pop %v241
    %v243 = vmul.f32 %v238, %v242
    %v244 = vpack.c.bf16 %v243, %v243
    %245 = vrot.lane.b32.xlu0 %v176, 64
    %v246 = vpop.permute.xlu0 %245
    %v248 = vsel %vm186, %v244, 0
    %vm250 = vcmask 1043456
    %v252 = vsel %vm250, %v246, 0
    %254 = vmatprep.subr.bf16.mxu0 0
    %255 = vmatpush1.bf16.msra.mxu0 %v252
    %256 = vmatprep.subr.bf16.mxu0 0
    %257 = vmatpush1.bf16.msra.mxu0 0
    %258 = vmatprep.subr.bf16.mxu0 0
    %259 = vmatpush1.bf16.msra.mxu0 0
    %260 = vmatprep.subr.bf16.mxu0 0
    %261 = vmatpush1.bf16.msra.mxu0 0
    %262 = vmatprep.subr.bf16.mxu0 0
    %263 = vmatpush1.bf16.msra.mxu0 0
    %264 = vmatprep.subr.bf16.mxu0 0
    %265 = vmatpush1.bf16.msra.mxu0 0
    %266 = vmatprep.subr.bf16.mxu0 0
    %267 = vmatpush1.bf16.msra.mxu0 0
    %268 = vmatprep.subr.bf16.mxu0 0
    %269 = vmatpush1.bf16.msra.mxu0 0
    %270 = vmatprep.subr.bf16.mxu0 0
    %271 = vmatpush1.bf16.msra.mxu0 0
    %272 = vmatprep.subr.bf16.mxu0 0
    %273 = vmatpush1.bf16.msra.mxu0 0
    %274 = vmatprep.subr.bf16.mxu0 0
    %275 = vmatpush1.bf16.msra.mxu0 0
    %276 = vmatprep.subr.bf16.mxu0 0
    %277 = vmatpush1.bf16.msra.mxu0 0
    %278 = vmatprep.subr.bf16.mxu0 0
    %279 = vmatpush1.bf16.msra.mxu0 0
    %280 = vmatprep.subr.bf16.mxu0 0
    %281 = vmatpush1.bf16.msra.mxu0 0
    %282 = vmatprep.subr.bf16.mxu0 0
    %283 = vmatpush1.bf16.msra.mxu0 0
    %284 = vmatprep.subr.bf16.mxu0 0
    %285 = vmatpush1.bf16.msra.mxu0 0
    %286 = vmatprep.mubr.bf16.mxu0 0
    %287 = vmatmul.mubr.bf16.gmra.mrb[0].mxu0 %v248
    %v288 = vpop.f32.mrb[0].mxu0
    %v289 = vadd.f32 0.0, %v288
    %v290 = vpop.f32.mrb[0].mxu0
    %v291 = vpop.f32.mrb[0].mxu0
    %v292 = vpop.f32.mrb[0].mxu0
    %293 = vdwg.mxu0
    %294 = vrot.lane.b32.xlu0 %v176, 120
    %v295 = vpop.permute.xlu0 %294
    %296 = vrot.lane.b32.xlu0 %v176, 88
    %v297 = vpop.permute.xlu0 %296
    %v299 = vsel %vm186, %v295, 0
    %v302 = vsel %vm186, %v297, 0
    %304 = vmatprep.subr.bf16.mxu0 0
    %305 = vmatpush1.bf16.xpose.msra.mxu0 %v302
    %306 = vmatprep.subr.bf16.mxu0 0
    %307 = vmatpush1.bf16.xpose.msra.mxu0 0
    %308 = vmatprep.subr.bf16.mxu0 0
    %309 = vmatpush1.bf16.xpose.msra.mxu0 0
    %310 = vmatprep.subr.bf16.mxu0 0
    %311 = vmatpush1.bf16.xpose.msra.mxu0 0
    %312 = vmatprep.subr.bf16.mxu0 0
    %313 = vmatpush1.bf16.xpose.msra.mxu0 0
    %314 = vmatprep.subr.bf16.mxu0 0
    %315 = vmatpush1.bf16.xpose.msra.mxu0 0
    %316 = vmatprep.subr.bf16.mxu0 0
    %317 = vmatpush1.bf16.xpose.msra.mxu0 0
    %318 = vmatprep.subr.bf16.mxu0 0
    %319 = vmatpush1.bf16.xpose.msra.mxu0 0
    %320 = vmatprep.subr.bf16.mxu0 0
    %321 = vmatpush1.bf16.xpose.msra.mxu0 0
    %322 = vmatprep.subr.bf16.mxu0 0
    %323 = vmatpush1.bf16.xpose.msra.mxu0 0
    %324 = vmatprep.subr.bf16.mxu0 0
    %325 = vmatpush1.bf16.xpose.msra.mxu0 0
    %326 = vmatprep.subr.bf16.mxu0 0
    %327 = vmatpush1.bf16.xpose.msra.mxu0 0
    %328 = vmatprep.subr.bf16.mxu0 0
    %329 = vmatpush1.bf16.xpose.msra.mxu0 0
    %330 = vmatprep.subr.bf16.mxu0 0
    %331 = vmatpush1.bf16.xpose.msra.mxu0 0
    %332 = vmatprep.subr.bf16.mxu0 0
    %333 = vmatpush1.bf16.xpose.msra.mxu0 0
    %334 = vmatprep.subr.bf16.mxu0 0
    %335 = vmatpush1.bf16.xpose.msra.mxu0 0
    %336 = vmatprep.mubr.bf16.mxu0 0
    %337 = vmatmul.mubr.bf16.gmra.mrb[0].mxu0 %v299
    %v338 = vpop.f32.mrb[0].mxu0
    %v339 = vadd.f32 %v181, %v338
    %v340 = vpop.f32.mrb[0].mxu0
    %v341 = vpop.f32.mrb[0].mxu0
    %v342 = vpop.f32.mrb[0].mxu0
    %343 = vdwg.mxu0
    %v344 = vsel %vm186, %v339, -inf
    %345 = vmax.xlane.f32.xlu0 %v344
    %v346 = vpop.xlane.xlu0 %345
    %v347 = vsub.f32 %v339, %v346
    %v348 = vmul.f32 %v347, 1.442695
    %v349 = vpow.pop %v348
    %v350 = vsel %vm186, %v349, 0.0
    %351 = vadd.xlane.f32.xlu0 %v350
    %v352 = vpop.xlane.xlu0 %351
    %v353 = vrcp.pop %v352
    %v354 = vmul.f32 %v349, %v353
    %v355 = vpack.c.bf16 %v354, %v354
    %356 = vrot.lane.b32.xlu0 %v176, 56
    %v357 = vpop.permute.xlu0 %356
    %v359 = vsel %vm186, %v355, 0
    %v362 = vsel %vm250, %v357, 0
    %364 = vmatprep.subr.bf16.mxu0 0
    %365 = vmatpush1.bf16.msra.mxu0 %v362
    %366 = vmatprep.subr.bf16.mxu0 0
    %367 = vmatpush1.bf16.msra.mxu0 0
    %368 = vmatprep.subr.bf16.mxu0 0
    %369 = vmatpush1.bf16.msra.mxu0 0
    %370 = vmatprep.subr.bf16.mxu0 0
    %371 = vmatpush1.bf16.msra.mxu0 0
    %372 = vmatprep.subr.bf16.mxu0 0
    %373 = vmatpush1.bf16.msra.mxu0 0
    %374 = vmatprep.subr.bf16.mxu0 0
    %375 = vmatpush1.bf16.msra.mxu0 0
    %376 = vmatprep.subr.bf16.mxu0 0
    %377 = vmatpush1.bf16.msra.mxu0 0
    %378 = vmatprep.subr.bf16.mxu0 0
    %379 = vmatpush1.bf16.msra.mxu0 0
    %380 = vmatprep.subr.bf16.mxu0 0
    %381 = vmatpush1.bf16.msra.mxu0 0
    %382 = vmatprep.subr.bf16.mxu0 0
    %383 = vmatpush1.bf16.msra.mxu0 0
    %384 = vmatprep.subr.bf16.mxu0 0
    %385 = vmatpush1.bf16.msra.mxu0 0
    %386 = vmatprep.subr.bf16.mxu0 0
    %387 = vmatpush1.bf16.msra.mxu0 0
    %388 = vmatprep.subr.bf16.mxu0 0
    %389 = vmatpush1.bf16.msra.mxu0 0
    %390 = vmatprep.subr.bf16.mxu0 0
    %391 = vmatpush1.bf16.msra.mxu0 0
    %392 = vmatprep.subr.bf16.mxu0 0
    %393 = vmatpush1.bf16.msra.mxu0 0
    %394 = vmatprep.subr.bf16.mxu0 0
    %395 = vmatpush1.bf16.msra.mxu0 0
    %396 = vmatprep.mubr.bf16.mxu0 0
    %397 = vmatmul.mubr.bf16.gmra.mrb[0].mxu0 %v359
    %v398 = vpop.f32.mrb[0].mxu0
    %v399 = vadd.f32 0.0, %v398
    %v400 = vpop.f32.mrb[0].mxu0
    %v401 = vpop.f32.mrb[0].mxu0
    %v402 = vpop.f32.mrb[0].mxu0
    %403 = vdwg.mxu0
    %404 = vrot.lane.b32.xlu0 %v176, 112
    %v405 = vpop.permute.xlu0 %404
    %406 = vrot.lane.b32.xlu0 %v176, 80
    %v407 = vpop.permute.xlu0 %406
    %v409 = vsel %vm186, %v405, 0
    %v412 = vsel %vm186, %v407, 0
    %414 = vmatprep.subr.bf16.mxu0 0
    %415 = vmatpush1.bf16.xpose.msra.mxu0 %v412
    %416 = vmatprep.subr.bf16.mxu0 0
    %417 = vmatpush1.bf16.xpose.msra.mxu0 0
    %418 = vmatprep.subr.bf16.mxu0 0
    %419 = vmatpush1.bf16.xpose.msra.mxu0 0
    %420 = vmatprep.subr.bf16.mxu0 0
    %421 = vmatpush1.bf16.xpose.msra.mxu0 0
    %422 = vmatprep.subr.bf16.mxu0 0
    %423 = vmatpush1.bf16.xpose.msra.mxu0 0
    %424 = vmatprep.subr.bf16.mxu0 0
    %425 = vmatpush1.bf16.xpose.msra.mxu0 0
    %426 = vmatprep.subr.bf16.mxu0 0
    %427 = vmatpush1.bf16.xpose.msra.mxu0 0
    %428 = vmatprep.subr.bf16.mxu0 0
    %429 = vmatpush1.bf16.xpose.msra.mxu0 0
    %430 = vmatprep.subr.bf16.mxu0 0
    %431 = vmatpush1.bf16.xpose.msra.mxu0 0
    %432 = vmatprep.subr.bf16.mxu0 0
    %433 = vmatpush1.bf16.xpose.msra.mxu0 0
    %434 = vmatprep.subr.bf16.mxu0 0
    %435 = vmatpush1.bf16.xpose.msra.mxu0 0
    %436 = vmatprep.subr.bf16.mxu0 0
    %437 = vmatpush1.bf16.xpose.msra.mxu0 0
    %438 = vmatprep.subr.bf16.mxu0 0
    %439 = vmatpush1.bf16.xpose.msra.mxu0 0
    %440 = vmatprep.subr.bf16.mxu0 0
    %441 = vmatpush1.bf16.xpose.msra.mxu0 0
    %442 = vmatprep.subr.bf16.mxu0 0
    %443 = vmatpush1.bf16.xpose.msra.mxu0 0
    %444 = vmatprep.subr.bf16.mxu0 0
    %445 = vmatpush1.bf16.xpose.msra.mxu0 0
    %446 = vmatprep.mubr.bf16.mxu0 0
    %447 = vmatmul.mubr.bf16.gmra.mrb[0].mxu0 %v409
    %v448 = vpop.f32.mrb[0].mxu0
    %v449 = vadd.f32 %v181, %v448
    %v450 = vpop.f32.mrb[0].mxu0
    %v451 = vpop.f32.mrb[0].mxu0
    %v452 = vpop.f32.mrb[0].mxu0
    %453 = vdwg.mxu0
    %v454 = vsel %vm186, %v449, -inf
    %455 = vmax.xlane.f32.xlu0 %v454
    %v456 = vpop.xlane.xlu0 %455
    %v457 = vsub.f32 %v449, %v456
    %v458 = vmul.f32 %v457, 1.442695
    %v459 = vpow.pop %v458
    %v460 = vsel %vm186, %v459, 0.0
    %461 = vadd.xlane.f32.xlu0 %v460
    %v462 = vpop.xlane.xlu0 %461
    %v463 = vrcp.pop %v462
    %v464 = vmul.f32 %v459, %v463
    %v465 = vpack.c.bf16 %v464, %v464
    %466 = vrot.lane.b32.xlu0 %v176, 48
    %v467 = vpop.permute.xlu0 %466
    %v469 = vsel %vm186, %v465, 0
    %v472 = vsel %vm250, %v467, 0
    %474 = vmatprep.subr.bf16.mxu0 0
    %475 = vmatpush1.bf16.msra.mxu0 %v472
    %476 = vmatprep.subr.bf16.mxu0 0
    %477 = vmatpush1.bf16.msra.mxu0 0
    %478 = vmatprep.subr.bf16.mxu0 0
    %479 = vmatpush1.bf16.msra.mxu0 0
    %480 = vmatprep.subr.bf16.mxu0 0
    %481 = vmatpush1.bf16.msra.mxu0 0
    %482 = vmatprep.subr.bf16.mxu0 0
    %483 = vmatpush1.bf16.msra.mxu0 0
    %484 = vmatprep.subr.bf16.mxu0 0
    %485 = vmatpush1.bf16.msra.mxu0 0
    %486 = vmatprep.subr.bf16.mxu0 0
    %487 = vmatpush1.bf16.msra.mxu0 0
    %488 = vmatprep.subr.bf16.mxu0 0
    %489 = vmatpush1.bf16.msra.mxu0 0
    %490 = vmatprep.subr.bf16.mxu0 0
    %491 = vmatpush1.bf16.msra.mxu0 0
    %492 = vmatprep.subr.bf16.mxu0 0
    %493 = vmatpush1.bf16.msra.mxu0 0
    %494 = vmatprep.subr.bf16.mxu0 0
    %495 = vmatpush1.bf16.msra.mxu0 0
    %496 = vmatprep.subr.bf16.mxu0 0
    %497 = vmatpush1.bf16.msra.mxu0 0
    %498 = vmatprep.subr.bf16.mxu0 0
    %499 = vmatpush1.bf16.msra.mxu0 0
    %500 = vmatprep.subr.bf16.mxu0 0
    %501 = vmatpush1.bf16.msra.mxu0 0
    %502 = vmatprep.subr.bf16.mxu0 0
    %503 = vmatpush1.bf16.msra.mxu0 0
    %504 = vmatprep.subr.bf16.mxu0 0
    %505 = vmatpush1.bf16.msra.mxu0 0
    %506 = vmatprep.mubr.bf16.mxu0 0
    %507 = vmatmul.mubr.bf16.gmra.mrb[0].mxu0 %v469
    %v508 = vpop.f32.mrb[0].mxu0
    %v509 = vadd.f32 0.0, %v508
    %v510 = vpop.f32.mrb[0].mxu0
    %v511 = vpop.f32.mrb[0].mxu0
    %v512 = vpop.f32.mrb[0].mxu0
    %513 = vdwg.mxu0
    %514 = vrot.lane.b32.xlu0 %v176, 104
    %v515 = vpop.permute.xlu0 %514
    %516 = vrot.lane.b32.xlu0 %v176, 72
    %v517 = vpop.permute.xlu0 %516
    %v519 = vsel %vm186, %v515, 0
    %v522 = vsel %vm186, %v517, 0
    %524 = vmatprep.subr.bf16.mxu0 0
    %525 = vmatpush1.bf16.xpose.msra.mxu0 %v522
    %526 = vmatprep.subr.bf16.mxu0 0
    %527 = vmatpush1.bf16.xpose.msra.mxu0 0
    %528 = vmatprep.subr.bf16.mxu0 0
    %529 = vmatpush1.bf16.xpose.msra.mxu0 0
    %530 = vmatprep.subr.bf16.mxu0 0
    %531 = vmatpush1.bf16.xpose.msra.mxu0 0
    %532 = vmatprep.subr.bf16.mxu0 0
    %533 = vmatpush1.bf16.xpose.msra.mxu0 0
    %534 = vmatprep.subr.bf16.mxu0 0
    %535 = vmatpush1.bf16.xpose.msra.mxu0 0
    %536 = vmatprep.subr.bf16.mxu0 0
    %537 = vmatpush1.bf16.xpose.msra.mxu0 0
    %538 = vmatprep.subr.bf16.mxu0 0
    %539 = vmatpush1.bf16.xpose.msra.mxu0 0
    %540 = vmatprep.subr.bf16.mxu0 0
    %541 = vmatpush1.bf16.xpose.msra.mxu0 0
    %542 = vmatprep.subr.bf16.mxu0 0
    %543 = vmatpush1.bf16.xpose.msra.mxu0 0
    %544 = vmatprep.subr.bf16.mxu0 0
    %545 = vmatpush1.bf16.xpose.msra.mxu0 0
    %546 = vmatprep.subr.bf16.mxu0 0
    %547 = vmatpush1.bf16.xpose.msra.mxu0 0
    %548 = vmatprep.subr.bf16.mxu0 0
    %549 = vmatpush1.bf16.xpose.msra.mxu0 0
    %550 = vmatprep.subr.bf16.mxu0 0
    %551 = vmatpush1.bf16.xpose.msra.mxu0 0
    %552 = vmatprep.subr.bf16.mxu0 0
    %553 = vmatpush1.bf16.xpose.msra.mxu0 0
    %554 = vmatprep.subr.bf16.mxu0 0
    %555 = vmatpush1.bf16.xpose.msra.mxu0 0
    %556 = vmatprep.mubr.bf16.mxu0 0
    %557 = vmatmul.mubr.bf16.gmra.mrb[0].mxu0 %v519
    %v558 = vpop.f32.mrb[0].mxu0
    %v559 = vadd.f32 %v181, %v558
    %v560 = vpop.f32.mrb[0].mxu0
    %v561 = vpop.f32.mrb[0].mxu0
    %v562 = vpop.f32.mrb[0].mxu0
    %563 = vdwg.mxu0
    %v564 = vsel %vm186, %v559, -inf
    %565 = vmax.xlane.f32.xlu0 %v564
    %v566 = vpop.xlane.xlu0 %565
    %v567 = vsub.f32 %v559, %v566
    %v568 = vmul.f32 %v567, 1.442695
    %v569 = vpow.pop %v568
    %v570 = vsel %vm186, %v569, 0.0
    %571 = vadd.xlane.f32.xlu0 %v570
    %v572 = vpop.xlane.xlu0 %571
    %v573 = vrcp.pop %v572
    %v574 = vmul.f32 %v569, %v573
    %v575 = vpack.c.bf16 %v574, %v574
    %576 = vrot.lane.b32.xlu0 %v176, 40
    %v577 = vpop.permute.xlu0 %576
    %v579 = vsel %vm186, %v575, 0
    %v582 = vsel %vm250, %v577, 0
    %584 = vmatprep.subr.bf16.mxu0 0
    %585 = vmatpush1.bf16.msra.mxu0 %v582
    %586 = vmatprep.subr.bf16.mxu0 0
    %587 = vmatpush1.bf16.msra.mxu0 0
    %588 = vmatprep.subr.bf16.mxu0 0
    %589 = vmatpush1.bf16.msra.mxu0 0
    %590 = vmatprep.subr.bf16.mxu0 0
    %591 = vmatpush1.bf16.msra.mxu0 0
    %592 = vmatprep.subr.bf16.mxu0 0
    %593 = vmatpush1.bf16.msra.mxu0 0
    %594 = vmatprep.subr.bf16.mxu0 0
    %595 = vmatpush1.bf16.msra.mxu0 0
    %596 = vmatprep.subr.bf16.mxu0 0
    %597 = vmatpush1.bf16.msra.mxu0 0
    %598 = vmatprep.subr.bf16.mxu0 0
    %599 = vmatpush1.bf16.msra.mxu0 0
    %600 = vmatprep.subr.bf16.mxu0 0
    %601 = vmatpush1.bf16.msra.mxu0 0
    %602 = vmatprep.subr.bf16.mxu0 0
    %603 = vmatpush1.bf16.msra.mxu0 0
    %604 = vmatprep.subr.bf16.mxu0 0
    %605 = vmatpush1.bf16.msra.mxu0 0
    %606 = vmatprep.subr.bf16.mxu0 0
    %607 = vmatpush1.bf16.msra.mxu0 0
    %608 = vmatprep.subr.bf16.mxu0 0
    %609 = vmatpush1.bf16.msra.mxu0 0
    %610 = vmatprep.subr.bf16.mxu0 0
    %611 = vmatpush1.bf16.msra.mxu0 0
    %612 = vmatprep.subr.bf16.mxu0 0
    %613 = vmatpush1.bf16.msra.mxu0 0
    %614 = vmatprep.subr.bf16.mxu0 0
    %615 = vmatpush1.bf16.msra.mxu0 0
    %616 = vmatprep.mubr.bf16.mxu0 0
    %617 = vmatmul.mubr.bf16.gmra.mrb[0].mxu0 %v579
    %v618 = vpop.f32.mrb[0].mxu0
    %v619 = vadd.f32 0.0, %v618
    %v620 = vpop.f32.mrb[0].mxu0
    %v621 = vpop.f32.mrb[0].mxu0
    %v622 = vpop.f32.mrb[0].mxu0
    %623 = vdwg.mxu0
    %625 = vrot.lane.b32.xlu0 %v399, 8
    %v626 = vpop.permute.xlu0 %625
    %629 = vrot.lane.b32.xlu0 %v509, 16
    %v630 = vpop.permute.xlu0 %629
    %633 = vrot.lane.b32.xlu0 %v619, 24
    %v634 = vpop.permute.xlu0 %633
    %v636 = vsel %vm186, %v289, %v626
    %vm637 = vcmask 130048
    %v638 = vsel %vm637, %v636, %v630
    %vm639 = vcmask 195584
    %v640 = vsel %vm639, %v638, %v634
    %s641 = scalar_lea.vmem %s1, 1
    %v642 = vld [vmem:[%s641] sm:$0x1]
    %v643 = vpack.c.bf16 %v172, %v172
    %v645 = vlaneseq
    %v646 = vshrl.u32 %v645, 7
    %v647 = vsub.s32 0, %v646
    %v648 = vrot.slane %v642, %v647
    %651 = vrot.lane.b32.xlu0 %v643, 96
    %v652 = vpop.permute.xlu0 %651
    %v654 = vsel %vm186, %v643, 0
    %v657 = vsel %vm186, %v652, 0
    %659 = vmatprep.subr.bf16.mxu0 0
    %660 = vmatpush1.bf16.xpose.msra.mxu0 %v657
    %661 = vmatprep.subr.bf16.mxu0 0
    %662 = vmatpush1.bf16.xpose.msra.mxu0 0
    %663 = vmatprep.subr.bf16.mxu0 0
    %664 = vmatpush1.bf16.xpose.msra.mxu0 0
    %665 = vmatprep.subr.bf16.mxu0 0
    %666 = vmatpush1.bf16.xpose.msra.mxu0 0
    %667 = vmatprep.subr.bf16.mxu0 0
    %668 = vmatpush1.bf16.xpose.msra.mxu0 0
    %669 = vmatprep.subr.bf16.mxu0 0
    %670 = vmatpush1.bf16.xpose.msra.mxu0 0
    %671 = vmatprep.subr.bf16.mxu0 0
    %672 = vmatpush1.bf16.xpose.msra.mxu0 0
    %673 = vmatprep.subr.bf16.mxu0 0
    %674 = vmatpush1.bf16.xpose.msra.mxu0 0
    %675 = vmatprep.subr.bf16.mxu0 0
    %676 = vmatpush1.bf16.xpose.msra.mxu0 0
    %677 = vmatprep.subr.bf16.mxu0 0
    %678 = vmatpush1.bf16.xpose.msra.mxu0 0
    %679 = vmatprep.subr.bf16.mxu0 0
    %680 = vmatpush1.bf16.xpose.msra.mxu0 0
    %681 = vmatprep.subr.bf16.mxu0 0
    %682 = vmatpush1.bf16.xpose.msra.mxu0 0
    %683 = vmatprep.subr.bf16.mxu0 0
    %684 = vmatpush1.bf16.xpose.msra.mxu0 0
    %685 = vmatprep.subr.bf16.mxu0 0
    %686 = vmatpush1.bf16.xpose.msra.mxu0 0
    %687 = vmatprep.subr.bf16.mxu0 0
    %688 = vmatpush1.bf16.xpose.msra.mxu0 0
    %689 = vmatprep.subr.bf16.mxu0 0
    %690 = vmatpush1.bf16.xpose.msra.mxu0 0
    %691 = vmatprep.mubr.bf16.mxu0 0
    %692 = vmatmul.mubr.bf16.gmra.mrb[0].mxu0 %v654
    %v693 = vpop.f32.mrb[0].mxu0
    %v694 = vadd.f32 %v648, %v693
    %v695 = vpop.f32.mrb[0].mxu0
    %v696 = vpop.f32.mrb[0].mxu0
    %v697 = vpop.f32.mrb[0].mxu0
    %698 = vdwg.mxu0
    %v699 = vsel %vm186, %v694, -inf
    %700 = vmax.xlane.f32.xlu0 %v699
    %v701 = vpop.xlane.xlu0 %700
    %v702 = vsub.f32 %v694, %v701
    %v703 = vmul.f32 %v702, 1.442695
    %v704 = vpow.pop %v703
    %v705 = vsel %vm186, %v704, 0.0
    %706 = vadd.xlane.f32.xlu0 %v705
    %v707 = vpop.xlane.xlu0 %706
    %v708 = vrcp.pop %v707
    %v709 = vmul.f32 %v704, %v708
    %v710 = vpack.c.bf16 %v709, %v709
    %711 = vrot.lane.b32.xlu0 %v643, 64
    %v712 = vpop.permute.xlu0 %711
    %v714 = vsel %vm186, %v710, 0
    %v717 = vsel %vm250, %v712, 0
    %719 = vmatprep.subr.bf16.mxu0 0
    %720 = vmatpush1.bf16.msra.mxu0 %v717
    %721 = vmatprep.subr.bf16.mxu0 0
    %722 = vmatpush1.bf16.msra.mxu0 0
    %723 = vmatprep.subr.bf16.mxu0 0
    %724 = vmatpush1.bf16.msra.mxu0 0
    %725 = vmatprep.subr.bf16.mxu0 0
    %726 = vmatpush1.bf16.msra.mxu0 0
    %727 = vmatprep.subr.bf16.mxu0 0
    %728 = vmatpush1.bf16.msra.mxu0 0
    %729 = vmatprep.subr.bf16.mxu0 0
    %730 = vmatpush1.bf16.msra.mxu0 0
    %731 = vmatprep.subr.bf16.mxu0 0
    %732 = vmatpush1.bf16.msra.mxu0 0
    %733 = vmatprep.subr.bf16.mxu0 0
    %734 = vmatpush1.bf16.msra.mxu0 0
    %735 = vmatprep.subr.bf16.mxu0 0
    %736 = vmatpush1.bf16.msra.mxu0 0
    %737 = vmatprep.subr.bf16.mxu0 0
    %738 = vmatpush1.bf16.msra.mxu0 0
    %739 = vmatprep.subr.bf16.mxu0 0
    %740 = vmatpush1.bf16.msra.mxu0 0
    %741 = vmatprep.subr.bf16.mxu0 0
    %742 = vmatpush1.bf16.msra.mxu0 0
    %743 = vmatprep.subr.bf16.mxu0 0
    %744 = vmatpush1.bf16.msra.mxu0 0
    %745 = vmatprep.subr.bf16.mxu0 0
    %746 = vmatpush1.bf16.msra.mxu0 0
    %747 = vmatprep.subr.bf16.mxu0 0
    %748 = vmatpush1.bf16.msra.mxu0 0
    %749 = vmatprep.subr.bf16.mxu0 0
    %750 = vmatpush1.bf16.msra.mxu0 0
    %751 = vmatprep.mubr.bf16.mxu0 0
    %752 = vmatmul.mubr.bf16.gmra.mrb[0].mxu0 %v714
    %v753 = vpop.f32.mrb[0].mxu0
    %v754 = vadd.f32 0.0, %v753
    %v755 = vpop.f32.mrb[0].mxu0
    %v756 = vpop.f32.mrb[0].mxu0
    %v757 = vpop.f32.mrb[0].mxu0
    %758 = vdwg.mxu0
    %759 = vrot.lane.b32.xlu0 %v643, 120
    %v760 = vpop.permute.xlu0 %759
    %761 = vrot.lane.b32.xlu0 %v643, 88
    %v762 = vpop.permute.xlu0 %761
    %v764 = vsel %vm186, %v760, 0
    %v767 = vsel %vm186, %v762, 0
    %769 = vmatprep.subr.bf16.mxu0 0
    %770 = vmatpush1.bf16.xpose.msra.mxu0 %v767
    %771 = vmatprep.subr.bf16.mxu0 0
    %772 = vmatpush1.bf16.xpose.msra.mxu0 0
    %773 = vmatprep.subr.bf16.mxu0 0
    %774 = vmatpush1.bf16.xpose.msra.mxu0 0
    %775 = vmatprep.subr.bf16.mxu0 0
    %776 = vmatpush1.bf16.xpose.msra.mxu0 0
    %777 = vmatprep.subr.bf16.mxu0 0
    %778 = vmatpush1.bf16.xpose.msra.mxu0 0
    %779 = vmatprep.subr.bf16.mxu0 0
    %780 = vmatpush1.bf16.xpose.msra.mxu0 0
    %781 = vmatprep.subr.bf16.mxu0 0
    %782 = vmatpush1.bf16.xpose.msra.mxu0 0
    %783 = vmatprep.subr.bf16.mxu0 0
    %784 = vmatpush1.bf16.xpose.msra.mxu0 0
    %785 = vmatprep.subr.bf16.mxu0 0
    %786 = vmatpush1.bf16.xpose.msra.mxu0 0
    %787 = vmatprep.subr.bf16.mxu0 0
    %788 = vmatpush1.bf16.xpose.msra.mxu0 0
    %789 = vmatprep.subr.bf16.mxu0 0
    %790 = vmatpush1.bf16.xpose.msra.mxu0 0
    %791 = vmatprep.subr.bf16.mxu0 0
    %792 = vmatpush1.bf16.xpose.msra.mxu0 0
    %793 = vmatprep.subr.bf16.mxu0 0
    %794 = vmatpush1.bf16.xpose.msra.mxu0 0
    %795 = vmatprep.subr.bf16.mxu0 0
    %796 = vmatpush1.bf16.xpose.msra.mxu0 0
    %797 = vmatprep.subr.bf16.mxu0 0
    %798 = vmatpush1.bf16.xpose.msra.mxu0 0
    %799 = vmatprep.subr.bf16.mxu0 0
    %800 = vmatpush1.bf16.xpose.msra.mxu0 0
    %801 = vmatprep.mubr.bf16.mxu0 0
    %802 = vmatmul.mubr.bf16.gmra.mrb[0].mxu0 %v764
    %v803 = vpop.f32.mrb[0].mxu0
    %v804 = vadd.f32 %v648, %v803
    %v805 = vpop.f32.mrb[0].mxu0
    %v806 = vpop.f32.mrb[0].mxu0
    %v807 = vpop.f32.mrb[0].mxu0
    %808 = vdwg.mxu0
    %v809 = vsel %vm186, %v804, -inf
    %810 = vmax.xlane.f32.xlu0 %v809
    %v811 = vpop.xlane.xlu0 %810
    %v812 = vsub.f32 %v804, %v811
    %v813 = vmul.f32 %v812, 1.442695
    %v814 = vpow.pop %v813
    %v815 = vsel %vm186, %v814, 0.0
    %816 = vadd.xlane.f32.xlu0 %v815
    %v817 = vpop.xlane.xlu0 %816
    %v818 = vrcp.pop %v817
    %v819 = vmul.f32 %v814, %v818
    %v820 = vpack.c.bf16 %v819, %v819
    %821 = vrot.lane.b32.xlu0 %v643, 56
    %v822 = vpop.permute.xlu0 %821
    %v824 = vsel %vm186, %v820, 0
    %v827 = vsel %vm250, %v822, 0
    %829 = vmatprep.subr.bf16.mxu0 0
    %830 = vmatpush1.bf16.msra.mxu0 %v827
    %831 = vmatprep.subr.bf16.mxu0 0
    %832 = vmatpush1.bf16.msra.mxu0 0
    %833 = vmatprep.subr.bf16.mxu0 0
    %834 = vmatpush1.bf16.msra.mxu0 0
    %835 = vmatprep.subr.bf16.mxu0 0
    %836 = vmatpush1.bf16.msra.mxu0 0
    %837 = vmatprep.subr.bf16.mxu0 0
    %838 = vmatpush1.bf16.msra.mxu0 0
    %839 = vmatprep.subr.bf16.mxu0 0
    %840 = vmatpush1.bf16.msra.mxu0 0
    %841 = vmatprep.subr.bf16.mxu0 0
    %842 = vmatpush1.bf16.msra.mxu0 0
    %843 = vmatprep.subr.bf16.mxu0 0
    %844 = vmatpush1.bf16.msra.mxu0 0
    %845 = vmatprep.subr.bf16.mxu0 0
    %846 = vmatpush1.bf16.msra.mxu0 0
    %847 = vmatprep.subr.bf16.mxu0 0
    %848 = vmatpush1.bf16.msra.mxu0 0
    %849 = vmatprep.subr.bf16.mxu0 0
    %850 = vmatpush1.bf16.msra.mxu0 0
    %851 = vmatprep.subr.bf16.mxu0 0
    %852 = vmatpush1.bf16.msra.mxu0 0
    %853 = vmatprep.subr.bf16.mxu0 0
    %854 = vmatpush1.bf16.msra.mxu0 0
    %855 = vmatprep.subr.bf16.mxu0 0
    %856 = vmatpush1.bf16.msra.mxu0 0
    %857 = vmatprep.subr.bf16.mxu0 0
    %858 = vmatpush1.bf16.msra.mxu0 0
    %859 = vmatprep.subr.bf16.mxu0 0
    %860 = vmatpush1.bf16.msra.mxu0 0
    %861 = vmatprep.mubr.bf16.mxu0 0
    %862 = vmatmul.mubr.bf16.gmra.mrb[0].mxu0 %v824
    %v863 = vpop.f32.mrb[0].mxu0
    %v864 = vadd.f32 0.0, %v863
    %v865 = vpop.f32.mrb[0].mxu0
    %v866 = vpop.f32.mrb[0].mxu0
    %v867 = vpop.f32.mrb[0].mxu0
    %868 = vdwg.mxu0
    %869 = vrot.lane.b32.xlu0 %v643, 112
    %v870 = vpop.permute.xlu0 %869
    %871 = vrot.lane.b32.xlu0 %v643, 80
    %v872 = vpop.permute.xlu0 %871
    %v874 = vsel %vm186, %v870, 0
    %v877 = vsel %vm186, %v872, 0
    %879 = vmatprep.subr.bf16.mxu0 0
    %880 = vmatpush1.bf16.xpose.msra.mxu0 %v877
    %881 = vmatprep.subr.bf16.mxu0 0
    %882 = vmatpush1.bf16.xpose.msra.mxu0 0
    %883 = vmatprep.subr.bf16.mxu0 0
    %884 = vmatpush1.bf16.xpose.msra.mxu0 0
    %885 = vmatprep.subr.bf16.mxu0 0
    %886 = vmatpush1.bf16.xpose.msra.mxu0 0
    %887 = vmatprep.subr.bf16.mxu0 0
    %888 = vmatpush1.bf16.xpose.msra.mxu0 0
    %889 = vmatprep.subr.bf16.mxu0 0
    %890 = vmatpush1.bf16.xpose.msra.mxu0 0
    %891 = vmatprep.subr.bf16.mxu0 0
    %892 = vmatpush1.bf16.xpose.msra.mxu0 0
    %893 = vmatprep.subr.bf16.mxu0 0
    %894 = vmatpush1.bf16.xpose.msra.mxu0 0
    %895 = vmatprep.subr.bf16.mxu0 0
    %896 = vmatpush1.bf16.xpose.msra.mxu0 0
    %897 = vmatprep.subr.bf16.mxu0 0
    %898 = vmatpush1.bf16.xpose.msra.mxu0 0
    %899 = vmatprep.subr.bf16.mxu0 0
    %900 = vmatpush1.bf16.xpose.msra.mxu0 0
    %901 = vmatprep.subr.bf16.mxu0 0
    %902 = vmatpush1.bf16.xpose.msra.mxu0 0
    %903 = vmatprep.subr.bf16.mxu0 0
    %904 = vmatpush1.bf16.xpose.msra.mxu0 0
    %905 = vmatprep.subr.bf16.mxu0 0
    %906 = vmatpush1.bf16.xpose.msra.mxu0 0
    %907 = vmatprep.subr.bf16.mxu0 0
    %908 = vmatpush1.bf16.xpose.msra.mxu0 0
    %909 = vmatprep.subr.bf16.mxu0 0
    %910 = vmatpush1.bf16.xpose.msra.mxu0 0
    %911 = vmatprep.mubr.bf16.mxu0 0
    %912 = vmatmul.mubr.bf16.gmra.mrb[0].mxu0 %v874
    %v913 = vpop.f32.mrb[0].mxu0
    %v914 = vadd.f32 %v648, %v913
    %v915 = vpop.f32.mrb[0].mxu0
    %v916 = vpop.f32.mrb[0].mxu0
    %v917 = vpop.f32.mrb[0].mxu0
    %918 = vdwg.mxu0
    %v919 = vsel %vm186, %v914, -inf
    %920 = vmax.xlane.f32.xlu0 %v919
    %v921 = vpop.xlane.xlu0 %920
    %v922 = vsub.f32 %v914, %v921
    %v923 = vmul.f32 %v922, 1.442695
    %v924 = vpow.pop %v923
    %v925 = vsel %vm186, %v924, 0.0
    %926 = vadd.xlane.f32.xlu0 %v925
    %v927 = vpop.xlane.xlu0 %926
    %v928 = vrcp.pop %v927
    %v929 = vmul.f32 %v924, %v928
    %v930 = vpack.c.bf16 %v929, %v929
    %931 = vrot.lane.b32.xlu0 %v643, 48
    %v932 = vpop.permute.xlu0 %931
    %v934 = vsel %vm186, %v930, 0
    %v937 = vsel %vm250, %v932, 0
    %939 = vmatprep.subr.bf16.mxu0 0
    %940 = vmatpush1.bf16.msra.mxu0 %v937
    %941 = vmatprep.subr.bf16.mxu0 0
    %942 = vmatpush1.bf16.msra.mxu0 0
    %943 = vmatprep.subr.bf16.mxu0 0
    %944 = vmatpush1.bf16.msra.mxu0 0
    %945 = vmatprep.subr.bf16.mxu0 0
    %946 = vmatpush1.bf16.msra.mxu0 0
    %947 = vmatprep.subr.bf16.mxu0 0
    %948 = vmatpush1.bf16.msra.mxu0 0
    %949 = vmatprep.subr.bf16.mxu0 0
    %950 = vmatpush1.bf16.msra.mxu0 0
    %951 = vmatprep.subr.bf16.mxu0 0
    %952 = vmatpush1.bf16.msra.mxu0 0
    %953 = vmatprep.subr.bf16.mxu0 0
    %954 = vmatpush1.bf16.msra.mxu0 0
    %955 = vmatprep.subr.bf16.mxu0 0
    %956 = vmatpush1.bf16.msra.mxu0 0
    %957 = vmatprep.subr.bf16.mxu0 0
    %958 = vmatpush1.bf16.msra.mxu0 0
    %959 = vmatprep.subr.bf16.mxu0 0
    %960 = vmatpush1.bf16.msra.mxu0 0
    %961 = vmatprep.subr.bf16.mxu0 0
    %962 = vmatpush1.bf16.msra.mxu0 0
    %963 = vmatprep.subr.bf16.mxu0 0
    %964 = vmatpush1.bf16.msra.mxu0 0
    %965 = vmatprep.subr.bf16.mxu0 0
    %966 = vmatpush1.bf16.msra.mxu0 0
    %967 = vmatprep.subr.bf16.mxu0 0
    %968 = vmatpush1.bf16.msra.mxu0 0
    %969 = vmatprep.subr.bf16.mxu0 0
    %970 = vmatpush1.bf16.msra.mxu0 0
    %971 = vmatprep.mubr.bf16.mxu0 0
    %972 = vmatmul.mubr.bf16.gmra.mrb[0].mxu0 %v934
    %v973 = vpop.f32.mrb[0].mxu0
    %v974 = vadd.f32 0.0, %v973
    %v975 = vpop.f32.mrb[0].mxu0
    %v976 = vpop.f32.mrb[0].mxu0
    %v977 = vpop.f32.mrb[0].mxu0
    %978 = vdwg.mxu0
    %979 = vrot.lane.b32.xlu0 %v643, 104
    %v980 = vpop.permute.xlu0 %979
    %981 = vrot.lane.b32.xlu0 %v643, 72
    %v982 = vpop.permute.xlu0 %981
    %v984 = vsel %vm186, %v980, 0
    %v987 = vsel %vm186, %v982, 0
    %989 = vmatprep.subr.bf16.mxu0 0
    %990 = vmatpush1.bf16.xpose.msra.mxu0 %v987
    %991 = vmatprep.subr.bf16.mxu0 0
    %992 = vmatpush1.bf16.xpose.msra.mxu0 0
    %993 = vmatprep.subr.bf16.mxu0 0
    %994 = vmatpush1.bf16.xpose.msra.mxu0 0
    %995 = vmatprep.subr.bf16.mxu0 0
    %996 = vmatpush1.bf16.xpose.msra.mxu0 0
    %997 = vmatprep.subr.bf16.mxu0 0
    %998 = vmatpush1.bf16.xpose.msra.mxu0 0
    %999 = vmatprep.subr.bf16.mxu0 0
    %1000 = vmatpush1.bf16.xpose.msra.mxu0 0
    %1001 = vmatprep.subr.bf16.mxu0 0
    %1002 = vmatpush1.bf16.xpose.msra.mxu0 0
    %1003 = vmatprep.subr.bf16.mxu0 0
    %1004 = vmatpush1.bf16.xpose.msra.mxu0 0
    %1005 = vmatprep.subr.bf16.mxu0 0
    %1006 = vmatpush1.bf16.xpose.msra.mxu0 0
    %1007 = vmatprep.subr.bf16.mxu0 0
    %1008 = vmatpush1.bf16.xpose.msra.mxu0 0
    %1009 = vmatprep.subr.bf16.mxu0 0
    %1010 = vmatpush1.bf16.xpose.msra.mxu0 0
    %1011 = vmatprep.subr.bf16.mxu0 0
    %1012 = vmatpush1.bf16.xpose.msra.mxu0 0
    %1013 = vmatprep.subr.bf16.mxu0 0
    %1014 = vmatpush1.bf16.xpose.msra.mxu0 0
    %1015 = vmatprep.subr.bf16.mxu0 0
    %1016 = vmatpush1.bf16.xpose.msra.mxu0 0
    %1017 = vmatprep.subr.bf16.mxu0 0
    %1018 = vmatpush1.bf16.xpose.msra.mxu0 0
    %1019 = vmatprep.subr.bf16.mxu0 0
    %1020 = vmatpush1.bf16.xpose.msra.mxu0 0
    %1021 = vmatprep.mubr.bf16.mxu0 0
    %1022 = vmatmul.mubr.bf16.gmra.mrb[0].mxu0 %v984
    %v1023 = vpop.f32.mrb[0].mxu0
    %v1024 = vadd.f32 %v648, %v1023
    %v1025 = vpop.f32.mrb[0].mxu0
    %v1026 = vpop.f32.mrb[0].mxu0
    %v1027 = vpop.f32.mrb[0].mxu0
    %1028 = vdwg.mxu0
    %v1029 = vsel %vm186, %v1024, -inf
    %1030 = vmax.xlane.f32.xlu0 %v1029
    %v1031 = vpop.xlane.xlu0 %1030
    %v1032 = vsub.f32 %v1024, %v1031
    %v1033 = vmul.f32 %v1032, 1.442695
    %v1034 = vpow.pop %v1033
    %v1035 = vsel %vm186, %v1034, 0.0
    %1036 = vadd.xlane.f32.xlu0 %v1035
    %v1037 = vpop.xlane.xlu0 %1036
    %v1038 = vrcp.pop %v1037
    %v1039 = vmul.f32 %v1034, %v1038
    %v1040 = vpack.c.bf16 %v1039, %v1039
    %1041 = vrot.lane.b32.xlu0 %v643, 40
    %v1042 = vpop.permute.xlu0 %1041
    %v1044 = vsel %vm186, %v1040, 0
    %v1047 = vsel %vm250, %v1042, 0
    %1049 = vmatprep.subr.bf16.mxu0 0
    %1050 = vmatpush1.bf16.msra.mxu0 %v1047
    %1051 = vmatprep.subr.bf16.mxu0 0
    %1052 = vmatpush1.bf16.msra.mxu0 0
    %1053 = vmatprep.subr.bf16.mxu0 0
    %1054 = vmatpush1.bf16.msra.mxu0 0
    %1055 = vmatprep.subr.bf16.mxu0 0
    %1056 = vmatpush1.bf16.msra.mxu0 0
    %1057 = vmatprep.subr.bf16.mxu0 0
    %1058 = vmatpush1.bf16.msra.mxu0 0
    %1059 = vmatprep.subr.bf16.mxu0 0
    %1060 = vmatpush1.bf16.msra.mxu0 0
    %1061 = vmatprep.subr.bf16.mxu0 0
    %1062 = vmatpush1.bf16.msra.mxu0 0
    %1063 = vmatprep.subr.bf16.mxu0 0
    %1064 = vmatpush1.bf16.msra.mxu0 0
    %1065 = vmatprep.subr.bf16.mxu0 0
    %1066 = vmatpush1.bf16.msra.mxu0 0
    %1067 = vmatprep.subr.bf16.mxu0 0
    %1068 = vmatpush1.bf16.msra.mxu0 0
    %1069 = vmatprep.subr.bf16.mxu0 0
    %1070 = vmatpush1.bf16.msra.mxu0 0
    %1071 = vmatprep.subr.bf16.mxu0 0
    %1072 = vmatpush1.bf16.msra.mxu0 0
    %1073 = vmatprep.subr.bf16.mxu0 0
    %1074 = vmatpush1.bf16.msra.mxu0 0
    %1075 = vmatprep.subr.bf16.mxu0 0
    %1076 = vmatpush1.bf16.msra.mxu0 0
    %1077 = vmatprep.subr.bf16.mxu0 0
    %1078 = vmatpush1.bf16.msra.mxu0 0
    %1079 = vmatprep.subr.bf16.mxu0 0
    %1080 = vmatpush1.bf16.msra.mxu0 0
    %1081 = vmatprep.mubr.bf16.mxu0 0
    %1082 = vmatmul.mubr.bf16.gmra.mrb[0].mxu0 %v1044
    %v1083 = vpop.f32.mrb[0].mxu0
    %v1084 = vadd.f32 0.0, %v1083
    %v1085 = vpop.f32.mrb[0].mxu0
    %v1086 = vpop.f32.mrb[0].mxu0
    %v1087 = vpop.f32.mrb[0].mxu0
    %1088 = vdwg.mxu0
    %1090 = vrot.lane.b32.xlu0 %v864, 8
    %v1091 = vpop.permute.xlu0 %1090
    %1094 = vrot.lane.b32.xlu0 %v974, 16
    %v1095 = vpop.permute.xlu0 %1094
    %1098 = vrot.lane.b32.xlu0 %v1084, 24
    %v1099 = vpop.permute.xlu0 %1098
    %v1101 = vsel %vm186, %v754, %v1091
    %v1102 = vsel %vm637, %v1101, %v1095
    %v1103 = vsel %vm639, %v1102, %v1099
    %v1104 = vpack.c.bf16 %v1103, %v640
    %v1105 = vld [vmem:[%s6] sm:$0xf]
    %v1106 = vld [vmem:[%s6 + $0x4] sm:$0xf]
    %v1107 = vld [vmem:[%s6 + $0x8] sm:$0xf]
    %v1108 = vld [vmem:[%s6 + $0xc] sm:$0xf]
    %v1109 = vld [vmem:[%s7] sm:$0x1]
    %v1111 = vlaneseq
    %v1112 = vshrl.u32 %v1111, 7
    %v1113 = vsub.s32 0, %v1112
    %v1114 = vrot.slane %v1109, %v1113
    %v1120 = vunpack.c.l.b16 %v1105
    %v1121 = vunpack.c.l.b16 %v1106
    %v1122 = vunpack.c.l.b16 %v1107
    %v1123 = vunpack.c.l.b16 %v1108
    %v1124 = vpack.c.b16 %v1121, %v1120
    %v1125 = vpack.c.b16 %v1123, %v1122
    %v1129 = vsel %vm61, %v1104, 0
    %1131 = vmatprep.subr.bf16.mxu0 0
    %1132 = vmatpush1.bf16.msra.mxu0 %v1124
    %1133 = vmatprep.subr.bf16.mxu0 0
    %1134 = vmatpush1.bf16.msra.mxu0 %v1125
    %1135 = vmatprep.subr.bf16.mxu0 0
    %1136 = vmatpush1.bf16.msra.mxu0 0
    %1137 = vmatprep.subr.bf16.mxu0 0
    %1138 = vmatpush1.bf16.msra.mxu0 0
    %1139 = vmatprep.subr.bf16.mxu0 0
    %1140 = vmatpush1.bf16.msra.mxu0 0
    %1141 = vmatprep.subr.bf16.mxu0 0
    %1142 = vmatpush1.bf16.msra.mxu0 0
    %1143 = vmatprep.subr.bf16.mxu0 0
    %1144 = vmatpush1.bf16.msra.mxu0 0
    %1145 = vmatprep.subr.bf16.mxu0 0
    %1146 = vmatpush1.bf16.msra.mxu0 0
    %1147 = vmatprep.subr.bf16.mxu0 0
    %1148 = vmatpush1.bf16.msra.mxu0 0
    %1149 = vmatprep.subr.bf16.mxu0 0
    %1150 = vmatpush1.bf16.msra.mxu0 0
    %1151 = vmatprep.subr.bf16.mxu0 0
    %1152 = vmatpush1.bf16.msra.mxu0 0
    %1153 = vmatprep.subr.bf16.mxu0 0
    %1154 = vmatpush1.bf16.msra.mxu0 0
    %1155 = vmatprep.subr.bf16.mxu0 0
    %1156 = vmatpush1.bf16.msra.mxu0 0
    %1157 = vmatprep.subr.bf16.mxu0 0
    %1158 = vmatpush1.bf16.msra.mxu0 0
    %1159 = vmatprep.subr.bf16.mxu0 0
    %1160 = vmatpush1.bf16.msra.mxu0 0
    %1161 = vmatprep.subr.bf16.mxu0 0
    %1162 = vmatpush1.bf16.msra.mxu0 0
    %1163 = vmatprep.mubr.bf16.mxu0 0
    %1164 = vmatmul.mubr.bf16.gmra.mrb[0].mxu0 %v1129
    %v1165 = vpop.f32.mrb[0].mxu0
    %v1166 = vadd.f32 %v1114, %v1165
    %v1167 = vpop.f32.mrb[0].mxu0
    %v1168 = vpop.f32.mrb[0].mxu0
    %v1169 = vadd.f32 %v1114, %v1168
    %v1170 = vpop.f32.mrb[0].mxu0
    %1171 = vdwg.mxu0
    %v1172 = vadd.f32 %v1166, %v59
    %v1173 = vadd.f32 %v1169, %v60
    %1174 = vst.msk [vmem:[#allocation7] sm:$0xff] %vm61, %v1172
    %1175 = vst.msk [vmem:[#allocation7 + $0x8] sm:$0xff] %vm61, %v1173
    // Predicated region
    $region42: #{tpu_custom_call.1} parent=1 // pred_check
      _
    $region43: #{tpu_custom_call.1} parent=1 // pred_check_branch
      %1177 = sbr.rel (0) target = $region45
    $region44: #{tpu_custom_call.1} parent=1 // pred_region
      %s1179 = ssub.s32 256, 256
      %1180 = vsyncadd [#allocation4], %s1179
      %s1181 = sshll.u32 [#allocation7], 4
      %s1182 = int_to_ptr.vmem [resolvable:$true] %s1181
      %1187 = dma.vmem_to_hbm [thread:$0]  %s1182, 256, %s8, [#allocation4], 128, 128, 8
    $region45: #{tpu_custom_call.1} parent=1 // pred_fallthru
      _
    // Predicated region
    $region46: #{tpu_custom_call.1} parent=1 // pred_check
      _
    $region47: #{tpu_custom_call.1} parent=1 // pred_check_branch
      %1189 = sbr.rel (0) target = $region49
    $region48: #{tpu_custom_call.1} parent=1 // pred_region
      %1190 = dma.done [#allocation4], 256
    $region49: #{tpu_custom_call.1} parent=1 // pred_fallthru
      _
    %1191 = vsyncpa [#allocation3], 1
    %1192 = vsyncpa [#allocation6], 1
    %1193 = vsyncpa [#allocation4], 1

</llo_original>
